<compile_context>
chip_gen: v5e
topology: v5e:2x2
jax: 0.10.0
libtpu: 0.0.40
codegen_flags: <defaults>
</compile_context>

<pallas_src>
import functools

import jax
import jax.numpy as jnp
import numpy as np
from jax.experimental import pallas as pl
from jax.experimental.pallas import tpu as pltpu


# ---------------------------------------------------------------------------
# Fused TransformerBlock kernel: one (batch) tile per grid step.
# ---------------------------------------------------------------------------
def _transformer_block_kernel(q_ref, k_ref, v_ref,
                              wq_ref, bq_ref, wk_ref, bk_ref, wv_ref, bv_ref,
                              wo_ref, bo_ref,
                              g1_ref, be1_ref,
                              w1_ref, b1_ref, w2_ref, b2_ref,
                              g2_ref, be2_ref,
                              o_ref, *, heads, head_dim, eps):
    f32 = jnp.float32
    x_q = q_ref[0].astype(f32)          # (Lq, E)
    x_k = k_ref[0].astype(f32)          # (Lk, E)
    x_v = v_ref[0].astype(f32)          # (Lk, E)
    Lq, E = x_q.shape

    # --- per-head Q/K/V projections (block-diagonal weights built on host;
    #     1/sqrt(embed_size) scale already folded into wq/bq) -------------------
    qp = jnp.dot(x_q, wq_ref[...], preferred_element_type=f32) + bq_ref[...]
    kp = jnp.dot(x_k, wk_ref[...], preferred_element_type=f32) + bk_ref[...]
    vp = jnp.dot(x_v, wv_ref[...], preferred_element_type=f32) + bv_ref[...]

    wo = wo_ref[...]                    # (E, E), already W_o^T

    # --- per-head scaled-dot-product attention, fc_out folded in --------------
    # TODO(synk): optional attention `mask` path (masked_fill before softmax) not implemented.
    attn_out = jnp.zeros((Lq, E), f32)
    nt = (((1,), (1,)), ((), ()))       # contract last dims ("NT" matmul, no transpose op)
    for h in range(heads):              # static unrolled loop (heads is small)
        lo = h * head_dim
        hi = lo + head_dim
        qh = qp[:, lo:hi]               # (Lq, D)
        kh = kp[:, lo:hi]               # (Lk, D)
        vh = vp[:, lo:hi]               # (Lk, D)
        e = jax.lax.dot_general(qh, kh, nt, preferred_element_type=f32)   # (Lq, Lk)
        e = e - jnp.max(e, axis=-1, keepdims=True)
        p = jnp.exp(e)
        a = p * pl.reciprocal(jnp.sum(p, axis=-1, keepdims=True), approx=False)
        ctx_h = jnp.dot(a, vh, preferred_element_type=f32)                # (Lq, D)
        attn_out = attn_out + jnp.dot(ctx_h, wo[lo:hi, :],
                                      preferred_element_type=f32)
    attn_out = attn_out + bo_ref[...]

    # --- residual + LayerNorm1 (dropout == identity in eval mode) -------------
    # TODO(synk): dropout is treated as identity (inference / p effectively 0).
    x = x_q + attn_out
    mu = jnp.mean(x, axis=-1, keepdims=True)
    xc = x - mu
    var = jnp.mean(xc * xc, axis=-1, keepdims=True)
    x = xc * jax.lax.rsqrt(var + eps) * g1_ref[...] + be1_ref[...]

    # --- feed-forward: Linear -> ReLU -> Linear (weights pre-transposed) ------
    hdn = jnp.maximum(jnp.dot(x, w1_ref[...], preferred_element_type=f32)
                      + b1_ref[...], 0.0)
    ffn = jnp.dot(hdn, w2_ref[...], preferred_element_type=f32) + b2_ref[...]

    # --- residual + LayerNorm2 -------------------------------------------------
    y = x + ffn
    mu2 = jnp.mean(y, axis=-1, keepdims=True)
    yc = y - mu2
    var2 = jnp.mean(yc * yc, axis=-1, keepdims=True)
    y = yc * jax.lax.rsqrt(var2 + eps) * g2_ref[...] + be2_ref[...]

    o_ref[0] = y.astype(o_ref.dtype)


# ---------------------------------------------------------------------------
# Host-side helpers
# ---------------------------------------------------------------------------
def _block_diag_t(w, heads):
    """(D, D) weight -> (H*D, H*D) block-diagonal matrix with w.T on the diagonal.

    x (L, H*D) @ result applies `x_h @ w.T` independently per head h.
    """
    d = w.shape[0]
    wt = w.T
    eye = jnp.eye(heads, dtype=w.dtype)
    return (eye[:, None, :, None] * wt[None, :, None, :]).reshape(heads * d, heads * d)


def transformer_block_pallas(query, key, value, params, *,
                             embed_size, heads, forward_expansion,
                             mask=None, eps=1e-5):
    """query/key/value: (N, L, E).  Returns (N, Lq, E)."""
    assert mask is None, "mask path not implemented"  # TODO(synk): mask support
    N, Lq, E = query.shape
    Lk = key.shape[1]
    assert E == embed_size
    D = embed_size // heads
    Hf = embed_size * forward_expansion
    scale = 1.0 / float(embed_size) ** 0.5

    # Pre-transposed / pre-scaled weights (done once, outside the hot path).
    wq_bd = _block_diag_t(params["wq"], heads) * scale
    bq = (jnp.tile(params["bq"], heads) * scale).reshape(1, E)
    wk_bd = _block_diag_t(params["wk"], heads)
    bk = jnp.tile(params["bk"], heads).reshape(1, E)
    wv_bd = _block_diag_t(params["wv"], heads)
    bv = jnp.tile(params["bv"], heads).reshape(1, E)
    wo_t = params["wo"].T                                   # (E, E)
    bo = params["bo"].reshape(1, E)
    g1 = params["ln1_w"].reshape(1, E)
    be1 = params["ln1_b"].reshape(1, E)
    w1_t = params["w1"].T                                   # (E, Hf)
    b1 = params["b1"].reshape(1, Hf)
    w2_t = params["w2"].T                                   # (Hf, E)
    b2 = params["b2"].reshape(1, E)
    g2 = params["ln2_w"].reshape(1, E)
    be2 = params["ln2_b"].reshape(1, E)

    seq_spec_q = pl.BlockSpec((1, Lq, E), lambda n: (n, 0, 0))
    seq_spec_k = pl.BlockSpec((1, Lk, E), lambda n: (n, 0, 0))

    def full(shape):
        zeros = (0,) * len(shape)
        return pl.BlockSpec(shape, lambda n, z=zeros: z)

    flops = N * (3 * 2 * Lq * E * E                     # block-diag Q/K/V projections
                 + heads * (4 * Lq * Lk * D)            # energy + attn@V
                 + 2 * Lq * E * E                       # fc_out (folded)
                 + 2 * Lq * E * Hf + 2 * Lq * Hf * E)   # FFN
    bytes_accessed = 4 * (query.size + key.size + value.size + N * Lq * E
                          + 4 * E * E + 2 * E * Hf + 9 * E + Hf)
    cost = pl.CostEstimate(flops=flops,
                           transcendentals=N * heads * Lq * Lk,
                           bytes_accessed=bytes_accessed)

    out = pl.pallas_call(
        functools.partial(_transformer_block_kernel,
                          heads=heads, head_dim=D, eps=eps),
        out_shape=jax.ShapeDtypeStruct((N, Lq, E), jnp.float32),
        grid_spec=pltpu.PrefetchScalarGridSpec(
            num_scalar_prefetch=0,
            grid=(N,),
            in_specs=[seq_spec_q, seq_spec_k, seq_spec_k,
                      full((E, E)), full((1, E)),
                      full((E, E)), full((1, E)),
                      full((E, E)), full((1, E)),
                      full((E, E)), full((1, E)),
                      full((1, E)), full((1, E)),
                      full((E, Hf)), full((1, Hf)),
                      full((Hf, E)), full((1, E)),
                      full((1, E)), full((1, E))],
            out_specs=pl.BlockSpec((1, Lq, E), lambda n: (n, 0, 0)),
        ),
        compiler_params=pltpu.CompilerParams(
            dimension_semantics=("parallel",)),
        cost_estimate=cost,
    )(query, key, value,
      wq_bd, bq, wk_bd, bk, wv_bd, bv,
      wo_t, bo, g1, be1, w1_t, b1, w2_t, b2, g2, be2)
    return out


# ---------------------------------------------------------------------------
# Pure-JAX reference (mirrors the PyTorch TransformerBlock forward, eval mode)
# ---------------------------------------------------------------------------
def transformer_block_ref(query, key, value, params, *,
                          embed_size, heads, eps=1e-5):
    N, Lq, E = query.shape
    Lk = key.shape[1]
    D = embed_size // heads
    q = query.reshape(N, Lq, heads, D) @ params["wq"].T + params["bq"]
    k = key.reshape(N, Lk, heads, D) @ params["wk"].T + params["bk"]
    v = value.reshape(N, Lk, heads, D) @ params["wv"].T + params["bv"]
    energy = jnp.einsum("nqhd,nkhd->nhqk", q, k) / (embed_size ** 0.5)
    attn = jax.nn.softmax(energy, axis=3)
    ctx = jnp.einsum("nhqk,nkhd->nqhd", attn, v).reshape(N, Lq, E)
    attn_out = ctx @ params["wo"].T + params["bo"]

    def ln(x, w, b):
        mu = jnp.mean(x, axis=-1, keepdims=True)
        var = jnp.mean((x - mu) ** 2, axis=-1, keepdims=True)
        return (x - mu) / jnp.sqrt(var + eps) * w + b

    x = ln(query + attn_out, params["ln1_w"], params["ln1_b"])
    h = jax.nn.relu(x @ params["w1"].T + params["b1"])
    ffn = h @ params["w2"].T + params["b2"]
    return ln(x + ffn, params["ln2_w"], params["ln2_b"])


if __name__ == "__main__":
    N, L = 2, 8
    embed_size, heads, forward_expansion = 32, 8, 4
    D = embed_size // heads
    Hf = embed_size * forward_expansion

    key0 = jax.random.PRNGKey(0)
    ks = jax.random.split(key0, 20)
    params = {
        "wq": jax.random.normal(ks[0], (D, D), jnp.float32) * 0.5,
        "bq": jax.random.normal(ks[1], (D,), jnp.float32) * 0.1,
        "wk": jax.random.normal(ks[2], (D, D), jnp.float32) * 0.5,
        "bk": jax.random.normal(ks[3], (D,), jnp.float32) * 0.1,
        "wv": jax.random.normal(ks[4], (D, D), jnp.float32) * 0.5,
        "bv": jax.random.normal(ks[5], (D,), jnp.float32) * 0.1,
        "wo": jax.random.normal(ks[6], (embed_size, embed_size), jnp.float32) * 0.2,
        "bo": jax.random.normal(ks[7], (embed_size,), jnp.float32) * 0.1,
        "ln1_w": 1.0 + 0.1 * jax.random.normal(ks[8], (embed_size,), jnp.float32),
        "ln1_b": 0.1 * jax.random.normal(ks[9], (embed_size,), jnp.float32),
        "w1": jax.random.normal(ks[10], (Hf, embed_size), jnp.float32) * 0.2,
        "b1": jax.random.normal(ks[11], (Hf,), jnp.float32) * 0.1,
        "w2": jax.random.normal(ks[12], (embed_size, Hf), jnp.float32) * 0.2,
        "b2": jax.random.normal(ks[13], (embed_size,), jnp.float32) * 0.1,
        "ln2_w": 1.0 + 0.1 * jax.random.normal(ks[14], (embed_size,), jnp.float32),
        "ln2_b": 0.1 * jax.random.normal(ks[15], (embed_size,), jnp.float32),
    }

    query = jax.random.normal(ks[16], (N, L, embed_size), jnp.float32)
    key_in = jax.random.normal(ks[17], (N, L, embed_size), jnp.float32)
    value = jax.random.normal(ks[18], (N, L, embed_size), jnp.float32)

    out = transformer_block_pallas(query, key_in, value, params,
                                   embed_size=embed_size, heads=heads,
                                   forward_expansion=forward_expansion)
    out = jax.block_until_ready(out)

    ref = transformer_block_ref(query, key_in, value, params,
                                embed_size=embed_size, heads=heads)
    np.testing.assert_allclose(np.asarray(out), np.asarray(ref),
                               rtol=1e-4, atol=1e-4)
    print("KERNEL_OK")
</pallas_src>

<mosaic_0001>
module attributes {stable_mosaic.version = 11 : i64} {
  func.func @_transformer_block_kernel(%arg0: i32, %arg1: memref<1x8x32xf32, #tpu.memory_space<vmem>>, %arg2: memref<1x8x32xf32, #tpu.memory_space<vmem>>, %arg3: memref<1x8x32xf32, #tpu.memory_space<vmem>>, %arg4: memref<32x32xf32, #tpu.memory_space<vmem>>, %arg5: memref<1x32xf32, #tpu.memory_space<vmem>>, %arg6: memref<32x32xf32, #tpu.memory_space<vmem>>, %arg7: memref<1x32xf32, #tpu.memory_space<vmem>>, %arg8: memref<32x32xf32, #tpu.memory_space<vmem>>, %arg9: memref<1x32xf32, #tpu.memory_space<vmem>>, %arg10: memref<32x32xf32, #tpu.memory_space<vmem>>, %arg11: memref<1x32xf32, #tpu.memory_space<vmem>>, %arg12: memref<1x32xf32, #tpu.memory_space<vmem>>, %arg13: memref<1x32xf32, #tpu.memory_space<vmem>>, %arg14: memref<32x128xf32, #tpu.memory_space<vmem>>, %arg15: memref<1x128xf32, #tpu.memory_space<vmem>>, %arg16: memref<128x32xf32, #tpu.memory_space<vmem>>, %arg17: memref<1x32xf32, #tpu.memory_space<vmem>>, %arg18: memref<1x32xf32, #tpu.memory_space<vmem>>, %arg19: memref<1x32xf32, #tpu.memory_space<vmem>>, %arg20: memref<1x8x32xf32, #tpu.memory_space<vmem>>) attributes {dimension_semantics = [#tpu.dimension_semantics<parallel>], iteration_bounds = array<i64: 2>, scalar_prefetch = 0 : i64, scratch_operands = 0 : i64, tpu.core_type = #tpu.core_type<tc>, window_params = [{transform_indices = @transform_0, window_bounds = array<i64: 1, 8, 32>}, {transform_indices = @transform_1, window_bounds = array<i64: 1, 8, 32>}, {transform_indices = @transform_2, window_bounds = array<i64: 1, 8, 32>}, {pipeline_mode = #tpu.pipeline_mode<synchronous>, transform_indices = @transform_3, window_bounds = array<i64: 32, 32>}, {pipeline_mode = #tpu.pipeline_mode<synchronous>, transform_indices = @transform_4, window_bounds = array<i64: 1, 32>}, {pipeline_mode = #tpu.pipeline_mode<synchronous>, transform_indices = @transform_5, window_bounds = array<i64: 32, 32>}, {pipeline_mode = #tpu.pipeline_mode<synchronous>, transform_indices = @transform_6, window_bounds = array<i64: 1, 32>}, {pipeline_mode = #tpu.pipeline_mode<synchronous>, transform_indices = @transform_7, window_bounds = array<i64: 32, 32>}, {pipeline_mode = #tpu.pipeline_mode<synchronous>, transform_indices = @transform_8, window_bounds = array<i64: 1, 32>}, {pipeline_mode = #tpu.pipeline_mode<synchronous>, transform_indices = @transform_9, window_bounds = array<i64: 32, 32>}, {pipeline_mode = #tpu.pipeline_mode<synchronous>, transform_indices = @transform_10, window_bounds = array<i64: 1, 32>}, {pipeline_mode = #tpu.pipeline_mode<synchronous>, transform_indices = @transform_11, window_bounds = array<i64: 1, 32>}, {pipeline_mode = #tpu.pipeline_mode<synchronous>, transform_indices = @transform_12, window_bounds = array<i64: 1, 32>}, {pipeline_mode = #tpu.pipeline_mode<synchronous>, transform_indices = @transform_13, window_bounds = array<i64: 32, 128>}, {pipeline_mode = #tpu.pipeline_mode<synchronous>, transform_indices = @transform_14, window_bounds = array<i64: 1, 128>}, {pipeline_mode = #tpu.pipeline_mode<synchronous>, transform_indices = @transform_15, window_bounds = array<i64: 128, 32>}, {pipeline_mode = #tpu.pipeline_mode<synchronous>, transform_indices = @transform_16, window_bounds = array<i64: 1, 32>}, {pipeline_mode = #tpu.pipeline_mode<synchronous>, transform_indices = @transform_17, window_bounds = array<i64: 1, 32>}, {pipeline_mode = #tpu.pipeline_mode<synchronous>, transform_indices = @transform_18, window_bounds = array<i64: 1, 32>}, {transform_indices = @transform_19, window_bounds = array<i64: 1, 8, 32>}]} {
    %c0 = arith.constant 0 : index
    %c0_0 = arith.constant 0 : index
    %c0_1 = arith.constant 0 : index
    %0 = vector.load %arg1[%c0, %c0_0, %c0_1] : memref<1x8x32xf32, #tpu.memory_space<vmem>>, vector<1x8x32xf32>
    %1 = vector.shape_cast %0 : vector<1x8x32xf32> to vector<8x32xf32>
    %c0_2 = arith.constant 0 : index
    %c0_3 = arith.constant 0 : index
    %c0_4 = arith.constant 0 : index
    %2 = vector.load %arg2[%c0_2, %c0_3, %c0_4] : memref<1x8x32xf32, #tpu.memory_space<vmem>>, vector<1x8x32xf32>
    %3 = vector.shape_cast %2 : vector<1x8x32xf32> to vector<8x32xf32>
    %c0_5 = arith.constant 0 : index
    %c0_6 = arith.constant 0 : index
    %c0_7 = arith.constant 0 : index
    %4 = vector.load %arg3[%c0_5, %c0_6, %c0_7] : memref<1x8x32xf32, #tpu.memory_space<vmem>>, vector<1x8x32xf32>
    %5 = vector.shape_cast %4 : vector<1x8x32xf32> to vector<8x32xf32>
    %c0_8 = arith.constant 0 : index
    %c0_9 = arith.constant 0 : index
    %6 = vector.load %arg4[%c0_8, %c0_9] : memref<32x32xf32, #tpu.memory_space<vmem>>, vector<32x32xf32>
    %cst = arith.constant dense<0.000000e+00> : vector<8x32xf32>
    %7 = tpu.matmul %1, %6, %cst {dimension_numbers = #tpu.dot_dimension_numbers<[1], [0], [0], [1], [0, 0, 1, 1], [], []>} : vector<8x32xf32>, vector<32x32xf32>, vector<8x32xf32> -> vector<8x32xf32>
    %c0_10 = arith.constant 0 : index
    %c0_11 = arith.constant 0 : index
    %8 = vector.load %arg5[%c0_10, %c0_11] : memref<1x32xf32, #tpu.memory_space<vmem>>, vector<1x32xf32>
    %9 = vector.broadcast %8 : vector<1x32xf32> to vector<8x32xf32>
    %10 = arith.addf %7, %9 : vector<8x32xf32>
    %c0_12 = arith.constant 0 : index
    %c0_13 = arith.constant 0 : index
    %11 = vector.load %arg6[%c0_12, %c0_13] : memref<32x32xf32, #tpu.memory_space<vmem>>, vector<32x32xf32>
    %cst_14 = arith.constant dense<0.000000e+00> : vector<8x32xf32>
    %12 = tpu.matmul %3, %11, %cst_14 {dimension_numbers = #tpu.dot_dimension_numbers<[1], [0], [0], [1], [0, 0, 1, 1], [], []>} : vector<8x32xf32>, vector<32x32xf32>, vector<8x32xf32> -> vector<8x32xf32>
    %c0_15 = arith.constant 0 : index
    %c0_16 = arith.constant 0 : index
    %13 = vector.load %arg7[%c0_15, %c0_16] : memref<1x32xf32, #tpu.memory_space<vmem>>, vector<1x32xf32>
    %14 = vector.broadcast %13 : vector<1x32xf32> to vector<8x32xf32>
    %15 = arith.addf %12, %14 : vector<8x32xf32>
    %c0_17 = arith.constant 0 : index
    %c0_18 = arith.constant 0 : index
    %16 = vector.load %arg8[%c0_17, %c0_18] : memref<32x32xf32, #tpu.memory_space<vmem>>, vector<32x32xf32>
    %cst_19 = arith.constant dense<0.000000e+00> : vector<8x32xf32>
    %17 = tpu.matmul %5, %16, %cst_19 {dimension_numbers = #tpu.dot_dimension_numbers<[1], [0], [0], [1], [0, 0, 1, 1], [], []>} : vector<8x32xf32>, vector<32x32xf32>, vector<8x32xf32> -> vector<8x32xf32>
    %c0_20 = arith.constant 0 : index
    %c0_21 = arith.constant 0 : index
    %18 = vector.load %arg9[%c0_20, %c0_21] : memref<1x32xf32, #tpu.memory_space<vmem>>, vector<1x32xf32>
    %19 = vector.broadcast %18 : vector<1x32xf32> to vector<8x32xf32>
    %20 = arith.addf %17, %19 : vector<8x32xf32>
    %c0_22 = arith.constant 0 : index
    %c0_23 = arith.constant 0 : index
    %21 = vector.load %arg10[%c0_22, %c0_23] : memref<32x32xf32, #tpu.memory_space<vmem>>, vector<32x32xf32>
    %cst_24 = arith.constant 0.000000e+00 : f32
    %22 = vector.broadcast %cst_24 : f32 to vector<8x32xf32>
    %23 = vector.extract_strided_slice %10 {offsets = [0, 0], sizes = [8, 4], strides = [1, 1]} : vector<8x32xf32> to vector<8x4xf32>
    %24 = vector.extract_strided_slice %15 {offsets = [0, 0], sizes = [8, 4], strides = [1, 1]} : vector<8x32xf32> to vector<8x4xf32>
    %25 = vector.extract_strided_slice %20 {offsets = [0, 0], sizes = [8, 4], strides = [1, 1]} : vector<8x32xf32> to vector<8x4xf32>
    %cst_25 = arith.constant dense<0.000000e+00> : vector<8x8xf32>
    %26 = tpu.matmul %23, %24, %cst_25 {dimension_numbers = #tpu.dot_dimension_numbers<[1], [1], [0], [0], [0, 0, 1, 0], [], []>} : vector<8x4xf32>, vector<8x4xf32>, vector<8x8xf32> -> vector<8x8xf32>
    %cst_26 = arith.constant dense<0xFF800000> : vector<8xf32>
    %27 = vector.multi_reduction <maximumf>, %26, %cst_26 [1] : vector<8x8xf32> to vector<8xf32>
    %28 = vector.shape_cast %27 : vector<8xf32> to vector<8x1xf32>
    %29 = vector.broadcast %28 : vector<8x1xf32> to vector<8x8xf32>
    %30 = arith.subf %26, %29 : vector<8x8xf32>
    %31 = math.exp %30 : vector<8x8xf32>
    %cst_27 = arith.constant dense<0.000000e+00> : vector<8xf32>
    %32 = vector.multi_reduction <add>, %31, %cst_27 [1] : vector<8x8xf32> to vector<8xf32>
    %33 = vector.shape_cast %32 : vector<8xf32> to vector<8x1xf32>
    %34 = tpu.reciprocal %33 : vector<8x1xf32> -> vector<8x1xf32>
    %35 = vector.broadcast %34 : vector<8x1xf32> to vector<8x8xf32>
    %36 = arith.mulf %31, %35 : vector<8x8xf32>
    %cst_28 = arith.constant dense<0.000000e+00> : vector<8x4xf32>
    %37 = tpu.matmul %36, %25, %cst_28 {dimension_numbers = #tpu.dot_dimension_numbers<[1], [0], [0], [1], [0, 0, 1, 1], [], []>} : vector<8x8xf32>, vector<8x4xf32>, vector<8x4xf32> -> vector<8x4xf32>
    %38 = vector.extract_strided_slice %21 {offsets = [0, 0], sizes = [4, 32], strides = [1, 1]} : vector<32x32xf32> to vector<4x32xf32>
    %cst_29 = arith.constant dense<0.000000e+00> : vector<8x32xf32>
    %39 = tpu.matmul %37, %38, %cst_29 {dimension_numbers = #tpu.dot_dimension_numbers<[1], [0], [0], [1], [0, 0, 1, 1], [], []>} : vector<8x4xf32>, vector<4x32xf32>, vector<8x32xf32> -> vector<8x32xf32>
    %40 = arith.addf %22, %39 : vector<8x32xf32>
    %41 = vector.extract_strided_slice %10 {offsets = [0, 4], sizes = [8, 4], strides = [1, 1]} : vector<8x32xf32> to vector<8x4xf32>
    %42 = vector.extract_strided_slice %15 {offsets = [0, 4], sizes = [8, 4], strides = [1, 1]} : vector<8x32xf32> to vector<8x4xf32>
    %43 = vector.extract_strided_slice %20 {offsets = [0, 4], sizes = [8, 4], strides = [1, 1]} : vector<8x32xf32> to vector<8x4xf32>
    %cst_30 = arith.constant dense<0.000000e+00> : vector<8x8xf32>
    %44 = tpu.matmul %41, %42, %cst_30 {dimension_numbers = #tpu.dot_dimension_numbers<[1], [1], [0], [0], [0, 0, 1, 0], [], []>} : vector<8x4xf32>, vector<8x4xf32>, vector<8x8xf32> -> vector<8x8xf32>
    %cst_31 = arith.constant dense<0xFF800000> : vector<8xf32>
    %45 = vector.multi_reduction <maximumf>, %44, %cst_31 [1] : vector<8x8xf32> to vector<8xf32>
    %46 = vector.shape_cast %45 : vector<8xf32> to vector<8x1xf32>
    %47 = vector.broadcast %46 : vector<8x1xf32> to vector<8x8xf32>
    %48 = arith.subf %44, %47 : vector<8x8xf32>
    %49 = math.exp %48 : vector<8x8xf32>
    %cst_32 = arith.constant dense<0.000000e+00> : vector<8xf32>
    %50 = vector.multi_reduction <add>, %49, %cst_32 [1] : vector<8x8xf32> to vector<8xf32>
    %51 = vector.shape_cast %50 : vector<8xf32> to vector<8x1xf32>
    %52 = tpu.reciprocal %51 : vector<8x1xf32> -> vector<8x1xf32>
    %53 = vector.broadcast %52 : vector<8x1xf32> to vector<8x8xf32>
    %54 = arith.mulf %49, %53 : vector<8x8xf32>
    %cst_33 = arith.constant dense<0.000000e+00> : vector<8x4xf32>
    %55 = tpu.matmul %54, %43, %cst_33 {dimension_numbers = #tpu.dot_dimension_numbers<[1], [0], [0], [1], [0, 0, 1, 1], [], []>} : vector<8x8xf32>, vector<8x4xf32>, vector<8x4xf32> -> vector<8x4xf32>
    %56 = vector.extract_strided_slice %21 {offsets = [4, 0], sizes = [4, 32], strides = [1, 1]} : vector<32x32xf32> to vector<4x32xf32>
    %cst_34 = arith.constant dense<0.000000e+00> : vector<8x32xf32>
    %57 = tpu.matmul %55, %56, %cst_34 {dimension_numbers = #tpu.dot_dimension_numbers<[1], [0], [0], [1], [0, 0, 1, 1], [], []>} : vector<8x4xf32>, vector<4x32xf32>, vector<8x32xf32> -> vector<8x32xf32>
    %58 = arith.addf %40, %57 : vector<8x32xf32>
    %59 = vector.extract_strided_slice %10 {offsets = [0, 8], sizes = [8, 4], strides = [1, 1]} : vector<8x32xf32> to vector<8x4xf32>
    %60 = vector.extract_strided_slice %15 {offsets = [0, 8], sizes = [8, 4], strides = [1, 1]} : vector<8x32xf32> to vector<8x4xf32>
    %61 = vector.extract_strided_slice %20 {offsets = [0, 8], sizes = [8, 4], strides = [1, 1]} : vector<8x32xf32> to vector<8x4xf32>
    %cst_35 = arith.constant dense<0.000000e+00> : vector<8x8xf32>
    %62 = tpu.matmul %59, %60, %cst_35 {dimension_numbers = #tpu.dot_dimension_numbers<[1], [1], [0], [0], [0, 0, 1, 0], [], []>} : vector<8x4xf32>, vector<8x4xf32>, vector<8x8xf32> -> vector<8x8xf32>
    %cst_36 = arith.constant dense<0xFF800000> : vector<8xf32>
    %63 = vector.multi_reduction <maximumf>, %62, %cst_36 [1] : vector<8x8xf32> to vector<8xf32>
    %64 = vector.shape_cast %63 : vector<8xf32> to vector<8x1xf32>
    %65 = vector.broadcast %64 : vector<8x1xf32> to vector<8x8xf32>
    %66 = arith.subf %62, %65 : vector<8x8xf32>
    %67 = math.exp %66 : vector<8x8xf32>
    %cst_37 = arith.constant dense<0.000000e+00> : vector<8xf32>
    %68 = vector.multi_reduction <add>, %67, %cst_37 [1] : vector<8x8xf32> to vector<8xf32>
    %69 = vector.shape_cast %68 : vector<8xf32> to vector<8x1xf32>
    %70 = tpu.reciprocal %69 : vector<8x1xf32> -> vector<8x1xf32>
    %71 = vector.broadcast %70 : vector<8x1xf32> to vector<8x8xf32>
    %72 = arith.mulf %67, %71 : vector<8x8xf32>
    %cst_38 = arith.constant dense<0.000000e+00> : vector<8x4xf32>
    %73 = tpu.matmul %72, %61, %cst_38 {dimension_numbers = #tpu.dot_dimension_numbers<[1], [0], [0], [1], [0, 0, 1, 1], [], []>} : vector<8x8xf32>, vector<8x4xf32>, vector<8x4xf32> -> vector<8x4xf32>
    %74 = vector.extract_strided_slice %21 {offsets = [8, 0], sizes = [4, 32], strides = [1, 1]} : vector<32x32xf32> to vector<4x32xf32>
    %cst_39 = arith.constant dense<0.000000e+00> : vector<8x32xf32>
    %75 = tpu.matmul %73, %74, %cst_39 {dimension_numbers = #tpu.dot_dimension_numbers<[1], [0], [0], [1], [0, 0, 1, 1], [], []>} : vector<8x4xf32>, vector<4x32xf32>, vector<8x32xf32> -> vector<8x32xf32>
    %76 = arith.addf %58, %75 : vector<8x32xf32>
    %77 = vector.extract_strided_slice %10 {offsets = [0, 12], sizes = [8, 4], strides = [1, 1]} : vector<8x32xf32> to vector<8x4xf32>
    %78 = vector.extract_strided_slice %15 {offsets = [0, 12], sizes = [8, 4], strides = [1, 1]} : vector<8x32xf32> to vector<8x4xf32>
    %79 = vector.extract_strided_slice %20 {offsets = [0, 12], sizes = [8, 4], strides = [1, 1]} : vector<8x32xf32> to vector<8x4xf32>
    %cst_40 = arith.constant dense<0.000000e+00> : vector<8x8xf32>
    %80 = tpu.matmul %77, %78, %cst_40 {dimension_numbers = #tpu.dot_dimension_numbers<[1], [1], [0], [0], [0, 0, 1, 0], [], []>} : vector<8x4xf32>, vector<8x4xf32>, vector<8x8xf32> -> vector<8x8xf32>
    %cst_41 = arith.constant dense<0xFF800000> : vector<8xf32>
    %81 = vector.multi_reduction <maximumf>, %80, %cst_41 [1] : vector<8x8xf32> to vector<8xf32>
    %82 = vector.shape_cast %81 : vector<8xf32> to vector<8x1xf32>
    %83 = vector.broadcast %82 : vector<8x1xf32> to vector<8x8xf32>
    %84 = arith.subf %80, %83 : vector<8x8xf32>
    %85 = math.exp %84 : vector<8x8xf32>
    %cst_42 = arith.constant dense<0.000000e+00> : vector<8xf32>
    %86 = vector.multi_reduction <add>, %85, %cst_42 [1] : vector<8x8xf32> to vector<8xf32>
    %87 = vector.shape_cast %86 : vector<8xf32> to vector<8x1xf32>
    %88 = tpu.reciprocal %87 : vector<8x1xf32> -> vector<8x1xf32>
    %89 = vector.broadcast %88 : vector<8x1xf32> to vector<8x8xf32>
    %90 = arith.mulf %85, %89 : vector<8x8xf32>
    %cst_43 = arith.constant dense<0.000000e+00> : vector<8x4xf32>
    %91 = tpu.matmul %90, %79, %cst_43 {dimension_numbers = #tpu.dot_dimension_numbers<[1], [0], [0], [1], [0, 0, 1, 1], [], []>} : vector<8x8xf32>, vector<8x4xf32>, vector<8x4xf32> -> vector<8x4xf32>
    %92 = vector.extract_strided_slice %21 {offsets = [12, 0], sizes = [4, 32], strides = [1, 1]} : vector<32x32xf32> to vector<4x32xf32>
    %cst_44 = arith.constant dense<0.000000e+00> : vector<8x32xf32>
    %93 = tpu.matmul %91, %92, %cst_44 {dimension_numbers = #tpu.dot_dimension_numbers<[1], [0], [0], [1], [0, 0, 1, 1], [], []>} : vector<8x4xf32>, vector<4x32xf32>, vector<8x32xf32> -> vector<8x32xf32>
    %94 = arith.addf %76, %93 : vector<8x32xf32>
    %95 = vector.extract_strided_slice %10 {offsets = [0, 16], sizes = [8, 4], strides = [1, 1]} : vector<8x32xf32> to vector<8x4xf32>
    %96 = vector.extract_strided_slice %15 {offsets = [0, 16], sizes = [8, 4], strides = [1, 1]} : vector<8x32xf32> to vector<8x4xf32>
    %97 = vector.extract_strided_slice %20 {offsets = [0, 16], sizes = [8, 4], strides = [1, 1]} : vector<8x32xf32> to vector<8x4xf32>
    %cst_45 = arith.constant dense<0.000000e+00> : vector<8x8xf32>
    %98 = tpu.matmul %95, %96, %cst_45 {dimension_numbers = #tpu.dot_dimension_numbers<[1], [1], [0], [0], [0, 0, 1, 0], [], []>} : vector<8x4xf32>, vector<8x4xf32>, vector<8x8xf32> -> vector<8x8xf32>
    %cst_46 = arith.constant dense<0xFF800000> : vector<8xf32>
    %99 = vector.multi_reduction <maximumf>, %98, %cst_46 [1] : vector<8x8xf32> to vector<8xf32>
    %100 = vector.shape_cast %99 : vector<8xf32> to vector<8x1xf32>
    %101 = vector.broadcast %100 : vector<8x1xf32> to vector<8x8xf32>
    %102 = arith.subf %98, %101 : vector<8x8xf32>
    %103 = math.exp %102 : vector<8x8xf32>
    %cst_47 = arith.constant dense<0.000000e+00> : vector<8xf32>
    %104 = vector.multi_reduction <add>, %103, %cst_47 [1] : vector<8x8xf32> to vector<8xf32>
    %105 = vector.shape_cast %104 : vector<8xf32> to vector<8x1xf32>
    %106 = tpu.reciprocal %105 : vector<8x1xf32> -> vector<8x1xf32>
    %107 = vector.broadcast %106 : vector<8x1xf32> to vector<8x8xf32>
    %108 = arith.mulf %103, %107 : vector<8x8xf32>
    %cst_48 = arith.constant dense<0.000000e+00> : vector<8x4xf32>
    %109 = tpu.matmul %108, %97, %cst_48 {dimension_numbers = #tpu.dot_dimension_numbers<[1], [0], [0], [1], [0, 0, 1, 1], [], []>} : vector<8x8xf32>, vector<8x4xf32>, vector<8x4xf32> -> vector<8x4xf32>
    %110 = vector.extract_strided_slice %21 {offsets = [16, 0], sizes = [4, 32], strides = [1, 1]} : vector<32x32xf32> to vector<4x32xf32>
    %cst_49 = arith.constant dense<0.000000e+00> : vector<8x32xf32>
    %111 = tpu.matmul %109, %110, %cst_49 {dimension_numbers = #tpu.dot_dimension_numbers<[1], [0], [0], [1], [0, 0, 1, 1], [], []>} : vector<8x4xf32>, vector<4x32xf32>, vector<8x32xf32> -> vector<8x32xf32>
    %112 = arith.addf %94, %111 : vector<8x32xf32>
    %113 = vector.extract_strided_slice %10 {offsets = [0, 20], sizes = [8, 4], strides = [1, 1]} : vector<8x32xf32> to vector<8x4xf32>
    %114 = vector.extract_strided_slice %15 {offsets = [0, 20], sizes = [8, 4], strides = [1, 1]} : vector<8x32xf32> to vector<8x4xf32>
    %115 = vector.extract_strided_slice %20 {offsets = [0, 20], sizes = [8, 4], strides = [1, 1]} : vector<8x32xf32> to vector<8x4xf32>
    %cst_50 = arith.constant dense<0.000000e+00> : vector<8x8xf32>
    %116 = tpu.matmul %113, %114, %cst_50 {dimension_numbers = #tpu.dot_dimension_numbers<[1], [1], [0], [0], [0, 0, 1, 0], [], []>} : vector<8x4xf32>, vector<8x4xf32>, vector<8x8xf32> -> vector<8x8xf32>
    %cst_51 = arith.constant dense<0xFF800000> : vector<8xf32>
    %117 = vector.multi_reduction <maximumf>, %116, %cst_51 [1] : vector<8x8xf32> to vector<8xf32>
    %118 = vector.shape_cast %117 : vector<8xf32> to vector<8x1xf32>
    %119 = vector.broadcast %118 : vector<8x1xf32> to vector<8x8xf32>
    %120 = arith.subf %116, %119 : vector<8x8xf32>
    %121 = math.exp %120 : vector<8x8xf32>
    %cst_52 = arith.constant dense<0.000000e+00> : vector<8xf32>
    %122 = vector.multi_reduction <add>, %121, %cst_52 [1] : vector<8x8xf32> to vector<8xf32>
    %123 = vector.shape_cast %122 : vector<8xf32> to vector<8x1xf32>
    %124 = tpu.reciprocal %123 : vector<8x1xf32> -> vector<8x1xf32>
    %125 = vector.broadcast %124 : vector<8x1xf32> to vector<8x8xf32>
    %126 = arith.mulf %121, %125 : vector<8x8xf32>
    %cst_53 = arith.constant dense<0.000000e+00> : vector<8x4xf32>
    %127 = tpu.matmul %126, %115, %cst_53 {dimension_numbers = #tpu.dot_dimension_numbers<[1], [0], [0], [1], [0, 0, 1, 1], [], []>} : vector<8x8xf32>, vector<8x4xf32>, vector<8x4xf32> -> vector<8x4xf32>
    %128 = vector.extract_strided_slice %21 {offsets = [20, 0], sizes = [4, 32], strides = [1, 1]} : vector<32x32xf32> to vector<4x32xf32>
    %cst_54 = arith.constant dense<0.000000e+00> : vector<8x32xf32>
    %129 = tpu.matmul %127, %128, %cst_54 {dimension_numbers = #tpu.dot_dimension_numbers<[1], [0], [0], [1], [0, 0, 1, 1], [], []>} : vector<8x4xf32>, vector<4x32xf32>, vector<8x32xf32> -> vector<8x32xf32>
    %130 = arith.addf %112, %129 : vector<8x32xf32>
    %131 = vector.extract_strided_slice %10 {offsets = [0, 24], sizes = [8, 4], strides = [1, 1]} : vector<8x32xf32> to vector<8x4xf32>
    %132 = vector.extract_strided_slice %15 {offsets = [0, 24], sizes = [8, 4], strides = [1, 1]} : vector<8x32xf32> to vector<8x4xf32>
    %133 = vector.extract_strided_slice %20 {offsets = [0, 24], sizes = [8, 4], strides = [1, 1]} : vector<8x32xf32> to vector<8x4xf32>
    %cst_55 = arith.constant dense<0.000000e+00> : vector<8x8xf32>
    %134 = tpu.matmul %131, %132, %cst_55 {dimension_numbers = #tpu.dot_dimension_numbers<[1], [1], [0], [0], [0, 0, 1, 0], [], []>} : vector<8x4xf32>, vector<8x4xf32>, vector<8x8xf32> -> vector<8x8xf32>
    %cst_56 = arith.constant dense<0xFF800000> : vector<8xf32>
    %135 = vector.multi_reduction <maximumf>, %134, %cst_56 [1] : vector<8x8xf32> to vector<8xf32>
    %136 = vector.shape_cast %135 : vector<8xf32> to vector<8x1xf32>
    %137 = vector.broadcast %136 : vector<8x1xf32> to vector<8x8xf32>
    %138 = arith.subf %134, %137 : vector<8x8xf32>
    %139 = math.exp %138 : vector<8x8xf32>
    %cst_57 = arith.constant dense<0.000000e+00> : vector<8xf32>
    %140 = vector.multi_reduction <add>, %139, %cst_57 [1] : vector<8x8xf32> to vector<8xf32>
    %141 = vector.shape_cast %140 : vector<8xf32> to vector<8x1xf32>
    %142 = tpu.reciprocal %141 : vector<8x1xf32> -> vector<8x1xf32>
    %143 = vector.broadcast %142 : vector<8x1xf32> to vector<8x8xf32>
    %144 = arith.mulf %139, %143 : vector<8x8xf32>
    %cst_58 = arith.constant dense<0.000000e+00> : vector<8x4xf32>
    %145 = tpu.matmul %144, %133, %cst_58 {dimension_numbers = #tpu.dot_dimension_numbers<[1], [0], [0], [1], [0, 0, 1, 1], [], []>} : vector<8x8xf32>, vector<8x4xf32>, vector<8x4xf32> -> vector<8x4xf32>
    %146 = vector.extract_strided_slice %21 {offsets = [24, 0], sizes = [4, 32], strides = [1, 1]} : vector<32x32xf32> to vector<4x32xf32>
    %cst_59 = arith.constant dense<0.000000e+00> : vector<8x32xf32>
    %147 = tpu.matmul %145, %146, %cst_59 {dimension_numbers = #tpu.dot_dimension_numbers<[1], [0], [0], [1], [0, 0, 1, 1], [], []>} : vector<8x4xf32>, vector<4x32xf32>, vector<8x32xf32> -> vector<8x32xf32>
    %148 = arith.addf %130, %147 : vector<8x32xf32>
    %149 = vector.extract_strided_slice %10 {offsets = [0, 28], sizes = [8, 4], strides = [1, 1]} : vector<8x32xf32> to vector<8x4xf32>
    %150 = vector.extract_strided_slice %15 {offsets = [0, 28], sizes = [8, 4], strides = [1, 1]} : vector<8x32xf32> to vector<8x4xf32>
    %151 = vector.extract_strided_slice %20 {offsets = [0, 28], sizes = [8, 4], strides = [1, 1]} : vector<8x32xf32> to vector<8x4xf32>
    %cst_60 = arith.constant dense<0.000000e+00> : vector<8x8xf32>
    %152 = tpu.matmul %149, %150, %cst_60 {dimension_numbers = #tpu.dot_dimension_numbers<[1], [1], [0], [0], [0, 0, 1, 0], [], []>} : vector<8x4xf32>, vector<8x4xf32>, vector<8x8xf32> -> vector<8x8xf32>
    %cst_61 = arith.constant dense<0xFF800000> : vector<8xf32>
    %153 = vector.multi_reduction <maximumf>, %152, %cst_61 [1] : vector<8x8xf32> to vector<8xf32>
    %154 = vector.shape_cast %153 : vector<8xf32> to vector<8x1xf32>
    %155 = vector.broadcast %154 : vector<8x1xf32> to vector<8x8xf32>
    %156 = arith.subf %152, %155 : vector<8x8xf32>
    %157 = math.exp %156 : vector<8x8xf32>
    %cst_62 = arith.constant dense<0.000000e+00> : vector<8xf32>
    %158 = vector.multi_reduction <add>, %157, %cst_62 [1] : vector<8x8xf32> to vector<8xf32>
    %159 = vector.shape_cast %158 : vector<8xf32> to vector<8x1xf32>
    %160 = tpu.reciprocal %159 : vector<8x1xf32> -> vector<8x1xf32>
    %161 = vector.broadcast %160 : vector<8x1xf32> to vector<8x8xf32>
    %162 = arith.mulf %157, %161 : vector<8x8xf32>
    %cst_63 = arith.constant dense<0.000000e+00> : vector<8x4xf32>
    %163 = tpu.matmul %162, %151, %cst_63 {dimension_numbers = #tpu.dot_dimension_numbers<[1], [0], [0], [1], [0, 0, 1, 1], [], []>} : vector<8x8xf32>, vector<8x4xf32>, vector<8x4xf32> -> vector<8x4xf32>
    %164 = vector.extract_strided_slice %21 {offsets = [28, 0], sizes = [4, 32], strides = [1, 1]} : vector<32x32xf32> to vector<4x32xf32>
    %cst_64 = arith.constant dense<0.000000e+00> : vector<8x32xf32>
    %165 = tpu.matmul %163, %164, %cst_64 {dimension_numbers = #tpu.dot_dimension_numbers<[1], [0], [0], [1], [0, 0, 1, 1], [], []>} : vector<8x4xf32>, vector<4x32xf32>, vector<8x32xf32> -> vector<8x32xf32>
    %166 = arith.addf %148, %165 : vector<8x32xf32>
    %c0_65 = arith.constant 0 : index
    %c0_66 = arith.constant 0 : index
    %167 = vector.load %arg11[%c0_65, %c0_66] : memref<1x32xf32, #tpu.memory_space<vmem>>, vector<1x32xf32>
    %168 = vector.broadcast %167 : vector<1x32xf32> to vector<8x32xf32>
    %169 = arith.addf %166, %168 : vector<8x32xf32>
    %170 = arith.addf %1, %169 : vector<8x32xf32>
    %cst_67 = arith.constant dense<0.000000e+00> : vector<8xf32>
    %171 = vector.multi_reduction <add>, %170, %cst_67 [1] : vector<8x32xf32> to vector<8xf32>
    %172 = vector.shape_cast %171 : vector<8xf32> to vector<8x1xf32>
    %cst_68 = arith.constant 3.200000e+01 : f32
    %173 = vector.broadcast %cst_68 : f32 to vector<8x1xf32>
    %174 = arith.divf %172, %173 : vector<8x1xf32>
    %175 = vector.broadcast %174 : vector<8x1xf32> to vector<8x32xf32>
    %176 = arith.subf %170, %175 : vector<8x32xf32>
    %177 = arith.mulf %176, %176 : vector<8x32xf32>
    %cst_69 = arith.constant dense<0.000000e+00> : vector<8xf32>
    %178 = vector.multi_reduction <add>, %177, %cst_69 [1] : vector<8x32xf32> to vector<8xf32>
    %179 = vector.shape_cast %178 : vector<8xf32> to vector<8x1xf32>
    %cst_70 = arith.constant 3.200000e+01 : f32
    %180 = vector.broadcast %cst_70 : f32 to vector<8x1xf32>
    %181 = arith.divf %179, %180 : vector<8x1xf32>
    %cst_71 = arith.constant 9.99999974E-6 : f32
    %182 = vector.broadcast %cst_71 : f32 to vector<8x1xf32>
    %183 = arith.addf %181, %182 : vector<8x1xf32>
    %184 = math.rsqrt %183 : vector<8x1xf32>
    %185 = vector.broadcast %184 : vector<8x1xf32> to vector<8x32xf32>
    %186 = arith.mulf %176, %185 : vector<8x32xf32>
    %c0_72 = arith.constant 0 : index
    %c0_73 = arith.constant 0 : index
    %187 = vector.load %arg12[%c0_72, %c0_73] : memref<1x32xf32, #tpu.memory_space<vmem>>, vector<1x32xf32>
    %188 = vector.broadcast %187 : vector<1x32xf32> to vector<8x32xf32>
    %189 = arith.mulf %186, %188 : vector<8x32xf32>
    %c0_74 = arith.constant 0 : index
    %c0_75 = arith.constant 0 : index
    %190 = vector.load %arg13[%c0_74, %c0_75] : memref<1x32xf32, #tpu.memory_space<vmem>>, vector<1x32xf32>
    %191 = vector.broadcast %190 : vector<1x32xf32> to vector<8x32xf32>
    %192 = arith.addf %189, %191 : vector<8x32xf32>
    %c0_76 = arith.constant 0 : index
    %c0_77 = arith.constant 0 : index
    %193 = vector.load %arg14[%c0_76, %c0_77] : memref<32x128xf32, #tpu.memory_space<vmem>>, vector<32x128xf32>
    %cst_78 = arith.constant dense<0.000000e+00> : vector<8x128xf32>
    %194 = tpu.matmul %192, %193, %cst_78 {dimension_numbers = #tpu.dot_dimension_numbers<[1], [0], [0], [1], [0, 0, 1, 1], [], []>} : vector<8x32xf32>, vector<32x128xf32>, vector<8x128xf32> -> vector<8x128xf32>
    %c0_79 = arith.constant 0 : index
    %c0_80 = arith.constant 0 : index
    %195 = vector.load %arg15[%c0_79, %c0_80] : memref<1x128xf32, #tpu.memory_space<vmem>>, vector<1x128xf32>
    %196 = vector.broadcast %195 : vector<1x128xf32> to vector<8x128xf32>
    %197 = arith.addf %194, %196 : vector<8x128xf32>
    %cst_81 = arith.constant 0.000000e+00 : f32
    %198 = vector.broadcast %cst_81 : f32 to vector<8x128xf32>
    %199 = arith.maximumf %197, %198 : vector<8x128xf32>
    %c0_82 = arith.constant 0 : index
    %c0_83 = arith.constant 0 : index
    %200 = vector.load %arg16[%c0_82, %c0_83] : memref<128x32xf32, #tpu.memory_space<vmem>>, vector<128x32xf32>
    %cst_84 = arith.constant dense<0.000000e+00> : vector<8x32xf32>
    %201 = tpu.matmul %199, %200, %cst_84 {dimension_numbers = #tpu.dot_dimension_numbers<[1], [0], [0], [1], [0, 0, 1, 1], [], []>} : vector<8x128xf32>, vector<128x32xf32>, vector<8x32xf32> -> vector<8x32xf32>
    %c0_85 = arith.constant 0 : index
    %c0_86 = arith.constant 0 : index
    %202 = vector.load %arg17[%c0_85, %c0_86] : memref<1x32xf32, #tpu.memory_space<vmem>>, vector<1x32xf32>
    %203 = vector.broadcast %202 : vector<1x32xf32> to vector<8x32xf32>
    %204 = arith.addf %201, %203 : vector<8x32xf32>
    %205 = arith.addf %192, %204 : vector<8x32xf32>
    %cst_87 = arith.constant dense<0.000000e+00> : vector<8xf32>
    %206 = vector.multi_reduction <add>, %205, %cst_87 [1] : vector<8x32xf32> to vector<8xf32>
    %207 = vector.shape_cast %206 : vector<8xf32> to vector<8x1xf32>
    %cst_88 = arith.constant 3.200000e+01 : f32
    %208 = vector.broadcast %cst_88 : f32 to vector<8x1xf32>
    %209 = arith.divf %207, %208 : vector<8x1xf32>
    %210 = vector.broadcast %209 : vector<8x1xf32> to vector<8x32xf32>
    %211 = arith.subf %205, %210 : vector<8x32xf32>
    %212 = arith.mulf %211, %211 : vector<8x32xf32>
    %cst_89 = arith.constant dense<0.000000e+00> : vector<8xf32>
    %213 = vector.multi_reduction <add>, %212, %cst_89 [1] : vector<8x32xf32> to vector<8xf32>
    %214 = vector.shape_cast %213 : vector<8xf32> to vector<8x1xf32>
    %cst_90 = arith.constant 3.200000e+01 : f32
    %215 = vector.broadcast %cst_90 : f32 to vector<8x1xf32>
    %216 = arith.divf %214, %215 : vector<8x1xf32>
    %cst_91 = arith.constant 9.99999974E-6 : f32
    %217 = vector.broadcast %cst_91 : f32 to vector<8x1xf32>
    %218 = arith.addf %216, %217 : vector<8x1xf32>
    %219 = math.rsqrt %218 : vector<8x1xf32>
    %220 = vector.broadcast %219 : vector<8x1xf32> to vector<8x32xf32>
    %221 = arith.mulf %211, %220 : vector<8x32xf32>
    %c0_92 = arith.constant 0 : index
    %c0_93 = arith.constant 0 : index
    %222 = vector.load %arg18[%c0_92, %c0_93] : memref<1x32xf32, #tpu.memory_space<vmem>>, vector<1x32xf32>
    %223 = vector.broadcast %222 : vector<1x32xf32> to vector<8x32xf32>
    %224 = arith.mulf %221, %223 : vector<8x32xf32>
    %c0_94 = arith.constant 0 : index
    %c0_95 = arith.constant 0 : index
    %225 = vector.load %arg19[%c0_94, %c0_95] : memref<1x32xf32, #tpu.memory_space<vmem>>, vector<1x32xf32>
    %226 = vector.broadcast %225 : vector<1x32xf32> to vector<8x32xf32>
    %227 = arith.addf %224, %226 : vector<8x32xf32>
    %c0_96 = arith.constant 0 : index
    %c0_97 = arith.constant 0 : index
    %c0_98 = arith.constant 0 : index
    %228 = vector.load %arg20[%c0_96, %c0_97, %c0_98] : memref<1x8x32xf32, #tpu.memory_space<vmem>>, vector<1x8x32xf32>
    %229 = vector.shape_cast %228 : vector<1x8x32xf32> to vector<8x32xf32>
    %230 = vector.shape_cast %227 : vector<8x32xf32> to vector<1x8x32xf32>
    tpu.vector_store %arg20[%c0_96, %c0_97, %c0_98], %230 {strides = array<i32>} : memref<1x8x32xf32, #tpu.memory_space<vmem>>, vector<1x8x32xf32>,
    return
  }
  func.func @transform_0(%arg0: i32) -> (i32, i32, i32) {
    %c0_i32 = arith.constant 0 : i32
    %c0_i32_0 = arith.constant 0 : i32
    %c0_i32_1 = arith.constant 0 : i32
    return %arg0, %c0_i32, %c0_i32_0 : i32, i32, i32
  }
  func.func @transform_1(%arg0: i32) -> (i32, i32, i32) {
    %c0_i32 = arith.constant 0 : i32
    %c0_i32_0 = arith.constant 0 : i32
    %c0_i32_1 = arith.constant 0 : i32
    return %arg0, %c0_i32, %c0_i32_0 : i32, i32, i32
  }
  func.func @transform_2(%arg0: i32) -> (i32, i32, i32) {
    %c0_i32 = arith.constant 0 : i32
    %c0_i32_0 = arith.constant 0 : i32
    %c0_i32_1 = arith.constant 0 : i32
    return %arg0, %c0_i32, %c0_i32_0 : i32, i32, i32
  }
  func.func @transform_3(%arg0: i32) -> (i32, i32) {
    %c0_i32 = arith.constant 0 : i32
    %c0_i32_0 = arith.constant 0 : i32
    %c0_i32_1 = arith.constant 0 : i32
    return %c0_i32, %c0_i32_0 : i32, i32
  }
  func.func @transform_4(%arg0: i32) -> (i32, i32) {
    %c0_i32 = arith.constant 0 : i32
    %c0_i32_0 = arith.constant 0 : i32
    %c0_i32_1 = arith.constant 0 : i32
    return %c0_i32, %c0_i32_0 : i32, i32
  }
  func.func @transform_5(%arg0: i32) -> (i32, i32) {
    %c0_i32 = arith.constant 0 : i32
    %c0_i32_0 = arith.constant 0 : i32
    %c0_i32_1 = arith.constant 0 : i32
    return %c0_i32, %c0_i32_0 : i32, i32
  }
  func.func @transform_6(%arg0: i32) -> (i32, i32) {
    %c0_i32 = arith.constant 0 : i32
    %c0_i32_0 = arith.constant 0 : i32
    %c0_i32_1 = arith.constant 0 : i32
    return %c0_i32, %c0_i32_0 : i32, i32
  }
  func.func @transform_7(%arg0: i32) -> (i32, i32) {
    %c0_i32 = arith.constant 0 : i32
    %c0_i32_0 = arith.constant 0 : i32
    %c0_i32_1 = arith.constant 0 : i32
    return %c0_i32, %c0_i32_0 : i32, i32
  }
  func.func @transform_8(%arg0: i32) -> (i32, i32) {
    %c0_i32 = arith.constant 0 : i32
    %c0_i32_0 = arith.constant 0 : i32
    %c0_i32_1 = arith.constant 0 : i32
    return %c0_i32, %c0_i32_0 : i32, i32
  }
  func.func @transform_9(%arg0: i32) -> (i32, i32) {
    %c0_i32 = arith.constant 0 : i32
    %c0_i32_0 = arith.constant 0 : i32
    %c0_i32_1 = arith.constant 0 : i32
    return %c0_i32, %c0_i32_0 : i32, i32
  }
  func.func @transform_10(%arg0: i32) -> (i32, i32) {
    %c0_i32 = arith.constant 0 : i32
    %c0_i32_0 = arith.constant 0 : i32
    %c0_i32_1 = arith.constant 0 : i32
    return %c0_i32, %c0_i32_0 : i32, i32
  }
  func.func @transform_11(%arg0: i32) -> (i32, i32) {
    %c0_i32 = arith.constant 0 : i32
    %c0_i32_0 = arith.constant 0 : i32
    %c0_i32_1 = arith.constant 0 : i32
    return %c0_i32, %c0_i32_0 : i32, i32
  }
  func.func @transform_12(%arg0: i32) -> (i32, i32) {
    %c0_i32 = arith.constant 0 : i32
    %c0_i32_0 = arith.constant 0 : i32
    %c0_i32_1 = arith.constant 0 : i32
    return %c0_i32, %c0_i32_0 : i32, i32
  }
  func.func @transform_13(%arg0: i32) -> (i32, i32) {
    %c0_i32 = arith.constant 0 : i32
    %c0_i32_0 = arith.constant 0 : i32
    %c0_i32_1 = arith.constant 0 : i32
    return %c0_i32, %c0_i32_0 : i32, i32
  }
  func.func @transform_14(%arg0: i32) -> (i32, i32) {
    %c0_i32 = arith.constant 0 : i32
    %c0_i32_0 = arith.constant 0 : i32
    %c0_i32_1 = arith.constant 0 : i32
    return %c0_i32, %c0_i32_0 : i32, i32
  }
  func.func @transform_15(%arg0: i32) -> (i32, i32) {
    %c0_i32 = arith.constant 0 : i32
    %c0_i32_0 = arith.constant 0 : i32
    %c0_i32_1 = arith.constant 0 : i32
    return %c0_i32, %c0_i32_0 : i32, i32
  }
  func.func @transform_16(%arg0: i32) -> (i32, i32) {
    %c0_i32 = arith.constant 0 : i32
    %c0_i32_0 = arith.constant 0 : i32
    %c0_i32_1 = arith.constant 0 : i32
    return %c0_i32, %c0_i32_0 : i32, i32
  }
  func.func @transform_17(%arg0: i32) -> (i32, i32) {
    %c0_i32 = arith.constant 0 : i32
    %c0_i32_0 = arith.constant 0 : i32
    %c0_i32_1 = arith.constant 0 : i32
    return %c0_i32, %c0_i32_0 : i32, i32
  }
  func.func @transform_18(%arg0: i32) -> (i32, i32) {
    %c0_i32 = arith.constant 0 : i32
    %c0_i32_0 = arith.constant 0 : i32
    %c0_i32_1 = arith.constant 0 : i32
    return %c0_i32, %c0_i32_0 : i32, i32
  }
  func.func @transform_19(%arg0: i32) -> (i32, i32, i32) {
    %c0_i32 = arith.constant 0 : i32
    %c0_i32_0 = arith.constant 0 : i32
    %c0_i32_1 = arith.constant 0 : i32
    return %arg0, %c0_i32, %c0_i32_0 : i32, i32, i32
  }
}

</mosaic_0001>

<llo_original>
// kernel: tpu_custom_call.1
$region0: #{tpu_custom_call.1}
  #allocation0 [shape = 'u32[]', space=smem, size = 0x4, offset = 0x4, fixed_abs, tag = 'smem constant byte address 0x4 - core index']
  #allocation1 [shape = 'u32[72,128]{1,0:T(1,128)}', space=vmem, size = 0x9000, scoped, tag = 'internal scratch']
  %s0 = inlined_call_operand.hbm [shape: f32[2,8,32], index: 0, kind: input, shape index: {}]
  %s1 = inlined_call_operand.hbm [shape: f32[2,8,32], index: 1, kind: input, shape index: {}]
  %s2 = inlined_call_operand.hbm [shape: f32[2,8,32], index: 2, kind: input, shape index: {}]
  %s3 = inlined_call_operand.vmem [shape: f32[32,32], index: 3, kind: input, shape index: {}]
  %s4 = inlined_call_operand.vmem [shape: f32[1,32], index: 4, kind: input, shape index: {}]
  %s5 = inlined_call_operand.vmem [shape: f32[32,32], index: 5, kind: input, shape index: {}]
  %s6 = inlined_call_operand.vmem [shape: f32[1,32], index: 6, kind: input, shape index: {}]
  %s7 = inlined_call_operand.vmem [shape: f32[32,32], index: 7, kind: input, shape index: {}]
  %s8 = inlined_call_operand.vmem [shape: f32[1,32], index: 8, kind: input, shape index: {}]
  %s9 = inlined_call_operand.vmem [shape: f32[32,32], index: 9, kind: input, shape index: {}]
  %s10 = inlined_call_operand.vmem [shape: f32[1,32], index: 10, kind: input, shape index: {}]
  %s11 = inlined_call_operand.vmem [shape: f32[1,32], index: 11, kind: input, shape index: {}]
  %s12 = inlined_call_operand.vmem [shape: f32[1,32], index: 12, kind: input, shape index: {}]
  %s13 = inlined_call_operand.vmem [shape: f32[32,128], index: 13, kind: input, shape index: {}]
  %s14 = inlined_call_operand.vmem [shape: f32[1,128], index: 14, kind: input, shape index: {}]
  %s15 = inlined_call_operand.vmem [shape: f32[128,32], index: 15, kind: input, shape index: {}]
  %s16 = inlined_call_operand.vmem [shape: f32[1,32], index: 16, kind: input, shape index: {}]
  %s17 = inlined_call_operand.vmem [shape: f32[1,32], index: 17, kind: input, shape index: {}]
  %s18 = inlined_call_operand.vmem [shape: f32[1,32], index: 18, kind: input, shape index: {}]
  %s19 = inlined_call_operand.hbm [shape: f32[2,8,32], index: 19, kind: output, shape index: {}]
  %s20 = sld [smem:[#allocation0]]
  $region121: #{tpu_custom_call.1} parent=0
    _
  %s22 = ssub.s32 1, %s20
  %s23 = scalar_select 0, %s22, %s20
  $region1: #{tpu_custom_call.1} parent=0
    #allocation2 [shape = 'u8[8192]{0}', space=vmem, size = 0x2000, scoped, tag = 'input window, operand 0']
    #allocation3 [shape = 's32[2]{0}', space=sflag, size = 0x8, scoped, tag = 'scoped memory for tpu_custom_call.1']
    #allocation4 [shape = 's32[2]{0}', space=sflag, size = 0x8, scoped, tag = 'scoped memory for tpu_custom_call.1']
    #allocation5 [shape = 'u8[8192]{0}', space=vmem, size = 0x2000, scoped, tag = 'input window, operand 1']
    #allocation6 [shape = 's32[2]{0}', space=sflag, size = 0x8, scoped, tag = 'scoped memory for tpu_custom_call.1']
    #allocation7 [shape = 'u8[8192]{0}', space=vmem, size = 0x2000, scoped, tag = 'input window, operand 2']
    #allocation8 [shape = 'u8[8192]{0}', space=vmem, size = 0x2000, scoped, tag = 'output window, operand 0']
    %24 = vsyncpa [#allocation3], 0
    %s25 = scalar_lea.sflag [#allocation3], 1
    %26 = vsyncpa %s25, 0
    %27 = vsyncpa [#allocation6], 0
    %s28 = scalar_lea.sflag [#allocation6], 1
    %29 = vsyncpa %s28, 0
    %30 = vsyncpa [#allocation4], 0
    %s31 = scalar_lea.sflag [#allocation4], 1
    %32 = vsyncpa %s31, 0
    loop: start=0, step=1, limit=4
    $region2: #{tpu_custom_call.1} parent=1 // loop_pre_header
      _
    $region3: #{tpu_custom_call.1} parent=1 // loop_header
      %s34 = sphi 0, %s38
      %p35 = scmp.ge.s32.totalorder %s34, 4
      %s44 = sphi 0, %s46
      %s47 = sphi 0, %s44
      %s48 = sphi 0, %s47
      %s64 = sphi 0, %s48
      %s70 = sphi 0, %s72
      %s73 = sphi 0, %s70
      %s74 = sphi 0, %s73
      %s90 = sphi 0, %s74
      %s96 = sphi 0, %s98
      %s99 = sphi 0, %s96
      %s100 = sphi 0, %s99
      %s116 = sphi 0, %s100
      %s120 = sphi 0, %s120
      %s122 = sphi 0, %s120
      %s123 = sphi 0, %s122
      %s137 = sphi 0, %s123
      %s141 = sphi 0, %s141
      %s143 = sphi 0, %s141
      %s144 = sphi 0, %s143
      %s158 = sphi 0, %s144
      %s162 = sphi 0, %s162
      %s164 = sphi 0, %s162
      %s165 = sphi 0, %s164
      %s179 = sphi 0, %s165
      %s183 = sphi 0, %s183
      %s185 = sphi 0, %s183
      %s186 = sphi 0, %s185
      %s200 = sphi 0, %s186
      %s204 = sphi 0, %s204
      %s206 = sphi 0, %s204
      %s207 = sphi 0, %s206
      %s221 = sphi 0, %s207
      %s225 = sphi 0, %s225
      %s227 = sphi 0, %s225
      %s228 = sphi 0, %s227
      %s242 = sphi 0, %s228
      %s246 = sphi 0, %s246
      %s248 = sphi 0, %s246
      %s249 = sphi 0, %s248
      %s263 = sphi 0, %s249
      %s267 = sphi 0, %s267
      %s269 = sphi 0, %s267
      %s270 = sphi 0, %s269
      %s284 = sphi 0, %s270
      %s288 = sphi 0, %s288
      %s290 = sphi 0, %s288
      %s291 = sphi 0, %s290
      %s305 = sphi 0, %s291
      %s309 = sphi 0, %s309
      %s311 = sphi 0, %s309
      %s312 = sphi 0, %s311
      %s326 = sphi 0, %s312
      %s330 = sphi 0, %s330
      %s332 = sphi 0, %s330
      %s333 = sphi 0, %s332
      %s347 = sphi 0, %s333
      %s351 = sphi 0, %s351
      %s353 = sphi 0, %s351
      %s354 = sphi 0, %s353
      %s368 = sphi 0, %s354
      %s372 = sphi 0, %s372
      %s374 = sphi 0, %s372
      %s375 = sphi 0, %s374
      %s389 = sphi 0, %s375
      %s393 = sphi 0, %s393
      %s395 = sphi 0, %s393
      %s396 = sphi 0, %s395
      %s410 = sphi 0, %s396
      %s414 = sphi 0, %s414
      %s416 = sphi 0, %s414
      %s417 = sphi 0, %s416
      %s431 = sphi 0, %s417
      %s435 = sphi 0, %s435
      %s437 = sphi 0, %s435
      %s438 = sphi 0, %s437
      %s452 = sphi 0, %s438
      %s458 = sphi 0, %s460
      %s461 = sphi 0, %s458
      %s462 = sphi 0, %s461
      %s478 = sphi 0, %s462
    $region4: #{tpu_custom_call.1} parent=1 // loop_header_branch
      %37 = sbr.rel (%p35) target = $region8
    $region5: #{tpu_custom_call.1} parent=1 // loop_body
      %s39 = ssub.s32 %s34, 1
      %s40 = ssub.s32 %s34, 2
      %s41 = sadd.s32 %s34, 1
      %s42 = ssub.s32 %s34, %s41
      %p43 = scmp.eq.s32.totalorder %s42, 0
      %s45 = sadd.s32 %s44, 1
      %s46 = scalar_select %p43, %s44, %s45
      %p49 = pneg %p43
      %p50 = scmp.eq.s32.totalorder %s34, 1
      %p51 = por %p49, %p50
      %p52 = scmp.ne.s32.totalorder %s44, %s47
      %p53 = scmp.eq.s32.totalorder %s34, 0
      %p54 = por %p52, %p53
      %p55 = scmp.ne.s32.totalorder %s44, %s47
      %p56 = scmp.eq.s32.totalorder %s39, 1
      %p57 = por %p55, %p56
      %p58 = scmp.ne.s32.totalorder %s47, %s48
      %p59 = scmp.eq.s32.totalorder %s39, 0
      %p60 = por %p58, %p59
      %p61 = scmp.ne.s32.totalorder %s47, %s48
      %p62 = scmp.eq.s32.totalorder %s40, 1
      %p63 = por %p61, %p62
      %p65 = scmp.ne.s32.totalorder %s48, %s64
      %p66 = scmp.eq.s32.totalorder %s40, 0
      %p67 = por %p65, %p66
      %s68 = ssub.s32 %s34, %s41
      %p69 = scmp.eq.s32.totalorder %s68, 0
      %s71 = sadd.s32 %s70, 1
      %s72 = scalar_select %p69, %s70, %s71
      %p75 = pneg %p69
      %p76 = scmp.eq.s32.totalorder %s34, 1
      %p77 = por %p75, %p76
      %p78 = scmp.ne.s32.totalorder %s70, %s73
      %p79 = scmp.eq.s32.totalorder %s34, 0
      %p80 = por %p78, %p79
      %p81 = scmp.ne.s32.totalorder %s70, %s73
      %p82 = scmp.eq.s32.totalorder %s39, 1
      %p83 = por %p81, %p82
      %p84 = scmp.ne.s32.totalorder %s73, %s74
      %p85 = scmp.eq.s32.totalorder %s39, 0
      %p86 = por %p84, %p85
      %p87 = scmp.ne.s32.totalorder %s73, %s74
      %p88 = scmp.eq.s32.totalorder %s40, 1
      %p89 = por %p87, %p88
      %p91 = scmp.ne.s32.totalorder %s74, %s90
      %p92 = scmp.eq.s32.totalorder %s40, 0
      %p93 = por %p91, %p92
      %s94 = ssub.s32 %s34, %s41
      %p95 = scmp.eq.s32.totalorder %s94, 0
      %s97 = sadd.s32 %s96, 1
      %s98 = scalar_select %p95, %s96, %s97
      %p101 = pneg %p95
      %p102 = scmp.eq.s32.totalorder %s34, 1
      %p103 = por %p101, %p102
      %p104 = scmp.ne.s32.totalorder %s96, %s99
      %p105 = scmp.eq.s32.totalorder %s34, 0
      %p106 = por %p104, %p105
      %p107 = scmp.ne.s32.totalorder %s96, %s99
      %p108 = scmp.eq.s32.totalorder %s39, 1
      %p109 = por %p107, %p108
      %p110 = scmp.ne.s32.totalorder %s99, %s100
      %p111 = scmp.eq.s32.totalorder %s39, 0
      %p112 = por %p110, %p111
      %p113 = scmp.ne.s32.totalorder %s99, %s100
      %p114 = scmp.eq.s32.totalorder %s40, 1
      %p115 = por %p113, %p114
      %p117 = scmp.ne.s32.totalorder %s100, %s116
      %p118 = scmp.eq.s32.totalorder %s40, 0
      %p119 = por %p117, %p118
      %s121 = sadd.s32 %s120, 1
      %p124 = scmp.eq.s32.totalorder %s34, 1
      %p125 = scmp.ne.s32.totalorder %s120, %s122
      %p126 = scmp.eq.s32.totalorder %s34, 0
      %p127 = por %p125, %p126
      %p128 = scmp.ne.s32.totalorder %s120, %s122
      %p129 = scmp.eq.s32.totalorder %s39, 1
      %p130 = por %p128, %p129
      %p131 = scmp.ne.s32.totalorder %s122, %s123
      %p132 = scmp.eq.s32.totalorder %s39, 0
      %p133 = por %p131, %p132
      %p134 = scmp.ne.s32.totalorder %s122, %s123
      %p135 = scmp.eq.s32.totalorder %s40, 1
      %p136 = por %p134, %p135
      %p138 = scmp.ne.s32.totalorder %s123, %s137
      %p139 = scmp.eq.s32.totalorder %s40, 0
      %p140 = por %p138, %p139
      %s142 = sadd.s32 %s141, 1
      %p145 = scmp.eq.s32.totalorder %s34, 1
      %p146 = scmp.ne.s32.totalorder %s141, %s143
      %p147 = scmp.eq.s32.totalorder %s34, 0
      %p148 = por %p146, %p147
      %p149 = scmp.ne.s32.totalorder %s141, %s143
      %p150 = scmp.eq.s32.totalorder %s39, 1
      %p151 = por %p149, %p150
      %p152 = scmp.ne.s32.totalorder %s143, %s144
      %p153 = scmp.eq.s32.totalorder %s39, 0
      %p154 = por %p152, %p153
      %p155 = scmp.ne.s32.totalorder %s143, %s144
      %p156 = scmp.eq.s32.totalorder %s40, 1
      %p157 = por %p155, %p156
      %p159 = scmp.ne.s32.totalorder %s144, %s158
      %p160 = scmp.eq.s32.totalorder %s40, 0
      %p161 = por %p159, %p160
      %s163 = sadd.s32 %s162, 1
      %p166 = scmp.eq.s32.totalorder %s34, 1
      %p167 = scmp.ne.s32.totalorder %s162, %s164
      %p168 = scmp.eq.s32.totalorder %s34, 0
      %p169 = por %p167, %p168
      %p170 = scmp.ne.s32.totalorder %s162, %s164
      %p171 = scmp.eq.s32.totalorder %s39, 1
      %p172 = por %p170, %p171
      %p173 = scmp.ne.s32.totalorder %s164, %s165
      %p174 = scmp.eq.s32.totalorder %s39, 0
      %p175 = por %p173, %p174
      %p176 = scmp.ne.s32.totalorder %s164, %s165
      %p177 = scmp.eq.s32.totalorder %s40, 1
      %p178 = por %p176, %p177
      %p180 = scmp.ne.s32.totalorder %s165, %s179
      %p181 = scmp.eq.s32.totalorder %s40, 0
      %p182 = por %p180, %p181
      %s184 = sadd.s32 %s183, 1
      %p187 = scmp.eq.s32.totalorder %s34, 1
      %p188 = scmp.ne.s32.totalorder %s183, %s185
      %p189 = scmp.eq.s32.totalorder %s34, 0
      %p190 = por %p188, %p189
      %p191 = scmp.ne.s32.totalorder %s183, %s185
      %p192 = scmp.eq.s32.totalorder %s39, 1
      %p193 = por %p191, %p192
      %p194 = scmp.ne.s32.totalorder %s185, %s186
      %p195 = scmp.eq.s32.totalorder %s39, 0
      %p196 = por %p194, %p195
      %p197 = scmp.ne.s32.totalorder %s185, %s186
      %p198 = scmp.eq.s32.totalorder %s40, 1
      %p199 = por %p197, %p198
      %p201 = scmp.ne.s32.totalorder %s186, %s200
      %p202 = scmp.eq.s32.totalorder %s40, 0
      %p203 = por %p201, %p202
      %s205 = sadd.s32 %s204, 1
      %p208 = scmp.eq.s32.totalorder %s34, 1
      %p209 = scmp.ne.s32.totalorder %s204, %s206
      %p210 = scmp.eq.s32.totalorder %s34, 0
      %p211 = por %p209, %p210
      %p212 = scmp.ne.s32.totalorder %s204, %s206
      %p213 = scmp.eq.s32.totalorder %s39, 1
      %p214 = por %p212, %p213
      %p215 = scmp.ne.s32.totalorder %s206, %s207
      %p216 = scmp.eq.s32.totalorder %s39, 0
      %p217 = por %p215, %p216
      %p218 = scmp.ne.s32.totalorder %s206, %s207
      %p219 = scmp.eq.s32.totalorder %s40, 1
      %p220 = por %p218, %p219
      %p222 = scmp.ne.s32.totalorder %s207, %s221
      %p223 = scmp.eq.s32.totalorder %s40, 0
      %p224 = por %p222, %p223
      %s226 = sadd.s32 %s225, 1
      %p229 = scmp.eq.s32.totalorder %s34, 1
      %p230 = scmp.ne.s32.totalorder %s225, %s227
      %p231 = scmp.eq.s32.totalorder %s34, 0
      %p232 = por %p230, %p231
      %p233 = scmp.ne.s32.totalorder %s225, %s227
      %p234 = scmp.eq.s32.totalorder %s39, 1
      %p235 = por %p233, %p234
      %p236 = scmp.ne.s32.totalorder %s227, %s228
      %p237 = scmp.eq.s32.totalorder %s39, 0
      %p238 = por %p236, %p237
      %p239 = scmp.ne.s32.totalorder %s227, %s228
      %p240 = scmp.eq.s32.totalorder %s40, 1
      %p241 = por %p239, %p240
      %p243 = scmp.ne.s32.totalorder %s228, %s242
      %p244 = scmp.eq.s32.totalorder %s40, 0
      %p245 = por %p243, %p244
      %s247 = sadd.s32 %s246, 1
      %p250 = scmp.eq.s32.totalorder %s34, 1
      %p251 = scmp.ne.s32.totalorder %s246, %s248
      %p252 = scmp.eq.s32.totalorder %s34, 0
      %p253 = por %p251, %p252
      %p254 = scmp.ne.s32.totalorder %s246, %s248
      %p255 = scmp.eq.s32.totalorder %s39, 1
      %p256 = por %p254, %p255
      %p257 = scmp.ne.s32.totalorder %s248, %s249
      %p258 = scmp.eq.s32.totalorder %s39, 0
      %p259 = por %p257, %p258
      %p260 = scmp.ne.s32.totalorder %s248, %s249
      %p261 = scmp.eq.s32.totalorder %s40, 1
      %p262 = por %p260, %p261
      %p264 = scmp.ne.s32.totalorder %s249, %s263
      %p265 = scmp.eq.s32.totalorder %s40, 0
      %p266 = por %p264, %p265
      %s268 = sadd.s32 %s267, 1
      %p271 = scmp.eq.s32.totalorder %s34, 1
      %p272 = scmp.ne.s32.totalorder %s267, %s269
      %p273 = scmp.eq.s32.totalorder %s34, 0
      %p274 = por %p272, %p273
      %p275 = scmp.ne.s32.totalorder %s267, %s269
      %p276 = scmp.eq.s32.totalorder %s39, 1
      %p277 = por %p275, %p276
      %p278 = scmp.ne.s32.totalorder %s269, %s270
      %p279 = scmp.eq.s32.totalorder %s39, 0
      %p280 = por %p278, %p279
      %p281 = scmp.ne.s32.totalorder %s269, %s270
      %p282 = scmp.eq.s32.totalorder %s40, 1
      %p283 = por %p281, %p282
      %p285 = scmp.ne.s32.totalorder %s270, %s284
      %p286 = scmp.eq.s32.totalorder %s40, 0
      %p287 = por %p285, %p286
      %s289 = sadd.s32 %s288, 1
      %p292 = scmp.eq.s32.totalorder %s34, 1
      %p293 = scmp.ne.s32.totalorder %s288, %s290
      %p294 = scmp.eq.s32.totalorder %s34, 0
      %p295 = por %p293, %p294
      %p296 = scmp.ne.s32.totalorder %s288, %s290
      %p297 = scmp.eq.s32.totalorder %s39, 1
      %p298 = por %p296, %p297
      %p299 = scmp.ne.s32.totalorder %s290, %s291
      %p300 = scmp.eq.s32.totalorder %s39, 0
      %p301 = por %p299, %p300
      %p302 = scmp.ne.s32.totalorder %s290, %s291
      %p303 = scmp.eq.s32.totalorder %s40, 1
      %p304 = por %p302, %p303
      %p306 = scmp.ne.s32.totalorder %s291, %s305
      %p307 = scmp.eq.s32.totalorder %s40, 0
      %p308 = por %p306, %p307
      %s310 = sadd.s32 %s309, 1
      %p313 = scmp.eq.s32.totalorder %s34, 1
      %p314 = scmp.ne.s32.totalorder %s309, %s311
      %p315 = scmp.eq.s32.totalorder %s34, 0
      %p316 = por %p314, %p315
      %p317 = scmp.ne.s32.totalorder %s309, %s311
      %p318 = scmp.eq.s32.totalorder %s39, 1
      %p319 = por %p317, %p318
      %p320 = scmp.ne.s32.totalorder %s311, %s312
      %p321 = scmp.eq.s32.totalorder %s39, 0
      %p322 = por %p320, %p321
      %p323 = scmp.ne.s32.totalorder %s311, %s312
      %p324 = scmp.eq.s32.totalorder %s40, 1
      %p325 = por %p323, %p324
      %p327 = scmp.ne.s32.totalorder %s312, %s326
      %p328 = scmp.eq.s32.totalorder %s40, 0
      %p329 = por %p327, %p328
      %s331 = sadd.s32 %s330, 1
      %p334 = scmp.eq.s32.totalorder %s34, 1
      %p335 = scmp.ne.s32.totalorder %s330, %s332
      %p336 = scmp.eq.s32.totalorder %s34, 0
      %p337 = por %p335, %p336
      %p338 = scmp.ne.s32.totalorder %s330, %s332
      %p339 = scmp.eq.s32.totalorder %s39, 1
      %p340 = por %p338, %p339
      %p341 = scmp.ne.s32.totalorder %s332, %s333
      %p342 = scmp.eq.s32.totalorder %s39, 0
      %p343 = por %p341, %p342
      %p344 = scmp.ne.s32.totalorder %s332, %s333
      %p345 = scmp.eq.s32.totalorder %s40, 1
      %p346 = por %p344, %p345
      %p348 = scmp.ne.s32.totalorder %s333, %s347
      %p349 = scmp.eq.s32.totalorder %s40, 0
      %p350 = por %p348, %p349
      %s352 = sadd.s32 %s351, 1
      %p355 = scmp.eq.s32.totalorder %s34, 1
      %p356 = scmp.ne.s32.totalorder %s351, %s353
      %p357 = scmp.eq.s32.totalorder %s34, 0
      %p358 = por %p356, %p357
      %p359 = scmp.ne.s32.totalorder %s351, %s353
      %p360 = scmp.eq.s32.totalorder %s39, 1
      %p361 = por %p359, %p360
      %p362 = scmp.ne.s32.totalorder %s353, %s354
      %p363 = scmp.eq.s32.totalorder %s39, 0
      %p364 = por %p362, %p363
      %p365 = scmp.ne.s32.totalorder %s353, %s354
      %p366 = scmp.eq.s32.totalorder %s40, 1
      %p367 = por %p365, %p366
      %p369 = scmp.ne.s32.totalorder %s354, %s368
      %p370 = scmp.eq.s32.totalorder %s40, 0
      %p371 = por %p369, %p370
      %s373 = sadd.s32 %s372, 1
      %p376 = scmp.eq.s32.totalorder %s34, 1
      %p377 = scmp.ne.s32.totalorder %s372, %s374
      %p378 = scmp.eq.s32.totalorder %s34, 0
      %p379 = por %p377, %p378
      %p380 = scmp.ne.s32.totalorder %s372, %s374
      %p381 = scmp.eq.s32.totalorder %s39, 1
      %p382 = por %p380, %p381
      %p383 = scmp.ne.s32.totalorder %s374, %s375
      %p384 = scmp.eq.s32.totalorder %s39, 0
      %p385 = por %p383, %p384
      %p386 = scmp.ne.s32.totalorder %s374, %s375
      %p387 = scmp.eq.s32.totalorder %s40, 1
      %p388 = por %p386, %p387
      %p390 = scmp.ne.s32.totalorder %s375, %s389
      %p391 = scmp.eq.s32.totalorder %s40, 0
      %p392 = por %p390, %p391
      %s394 = sadd.s32 %s393, 1
      %p397 = scmp.eq.s32.totalorder %s34, 1
      %p398 = scmp.ne.s32.totalorder %s393, %s395
      %p399 = scmp.eq.s32.totalorder %s34, 0
      %p400 = por %p398, %p399
      %p401 = scmp.ne.s32.totalorder %s393, %s395
      %p402 = scmp.eq.s32.totalorder %s39, 1
      %p403 = por %p401, %p402
      %p404 = scmp.ne.s32.totalorder %s395, %s396
      %p405 = scmp.eq.s32.totalorder %s39, 0
      %p406 = por %p404, %p405
      %p407 = scmp.ne.s32.totalorder %s395, %s396
      %p408 = scmp.eq.s32.totalorder %s40, 1
      %p409 = por %p407, %p408
      %p411 = scmp.ne.s32.totalorder %s396, %s410
      %p412 = scmp.eq.s32.totalorder %s40, 0
      %p413 = por %p411, %p412
      %s415 = sadd.s32 %s414, 1
      %p418 = scmp.eq.s32.totalorder %s34, 1
      %p419 = scmp.ne.s32.totalorder %s414, %s416
      %p420 = scmp.eq.s32.totalorder %s34, 0
      %p421 = por %p419, %p420
      %p422 = scmp.ne.s32.totalorder %s414, %s416
      %p423 = scmp.eq.s32.totalorder %s39, 1
      %p424 = por %p422, %p423
      %p425 = scmp.ne.s32.totalorder %s416, %s417
      %p426 = scmp.eq.s32.totalorder %s39, 0
      %p427 = por %p425, %p426
      %p428 = scmp.ne.s32.totalorder %s416, %s417
      %p429 = scmp.eq.s32.totalorder %s40, 1
      %p430 = por %p428, %p429
      %p432 = scmp.ne.s32.totalorder %s417, %s431
      %p433 = scmp.eq.s32.totalorder %s40, 0
      %p434 = por %p432, %p433
      %s436 = sadd.s32 %s435, 1
      %p439 = scmp.eq.s32.totalorder %s34, 1
      %p440 = scmp.ne.s32.totalorder %s435, %s437
      %p441 = scmp.eq.s32.totalorder %s34, 0
      %p442 = por %p440, %p441
      %p443 = scmp.ne.s32.totalorder %s435, %s437
      %p444 = scmp.eq.s32.totalorder %s39, 1
      %p445 = por %p443, %p444
      %p446 = scmp.ne.s32.totalorder %s437, %s438
      %p447 = scmp.eq.s32.totalorder %s39, 0
      %p448 = por %p446, %p447
      %p449 = scmp.ne.s32.totalorder %s437, %s438
      %p450 = scmp.eq.s32.totalorder %s40, 1
      %p451 = por %p449, %p450
      %p453 = scmp.ne.s32.totalorder %s438, %s452
      %p454 = scmp.eq.s32.totalorder %s40, 0
      %p455 = por %p453, %p454
      %s456 = ssub.s32 %s34, %s41
      %p457 = scmp.eq.s32.totalorder %s456, 0
      %s459 = sadd.s32 %s458, 1
      %s460 = scalar_select %p457, %s458, %s459
      %p463 = pneg %p457
      %p464 = scmp.eq.s32.totalorder %s34, 1
      %p465 = por %p463, %p464
      %p466 = scmp.ne.s32.totalorder %s458, %s461
      %p467 = scmp.eq.s32.totalorder %s34, 0
      %p468 = por %p466, %p467
      %p469 = scmp.ne.s32.totalorder %s458, %s461
      %p470 = scmp.eq.s32.totalorder %s39, 1
      %p471 = por %p469, %p470
      %p472 = scmp.ne.s32.totalorder %s461, %s462
      %p473 = scmp.eq.s32.totalorder %s39, 0
      %p474 = por %p472, %p473
      %p475 = scmp.ne.s32.totalorder %s461, %s462
      %p476 = scmp.eq.s32.totalorder %s40, 1
      %p477 = por %p475, %p476
      %p479 = scmp.ne.s32.totalorder %s462, %s478
      %p480 = scmp.eq.s32.totalorder %s40, 0
      %p481 = por %p479, %p480
      %p482 = scmp.le.s32.totalorder 1, %s34
      %p483 = scmp.lt.s32.totalorder %s34, 3
      %p484 = pnand %p482, %p483
      %p485 = pneg %p484
      // Predicated region
      $region9: #{tpu_custom_call.1} parent=5 // pred_check
        _
      $region10: #{tpu_custom_call.1} parent=5 // pred_check_branch
        %487 = sbr.rel (%p484) target = $region12
      $region11: #{tpu_custom_call.1} parent=5 // pred_region
        %s488 = ssub.s32 %s34, 1
        // Predicated region
        $region13: #{tpu_custom_call.1} parent=11 // pred_check
          %p489 = pneg %p133
        $region14: #{tpu_custom_call.1} parent=11 // pred_check_branch
          %491 = sbr.rel (%p489) target = $region16
        $region15: #{tpu_custom_call.1} parent=11 // pred_region
          _
        $region16: #{tpu_custom_call.1} parent=11 // pred_fallthru
          _
        // Predicated region
        $region17: #{tpu_custom_call.1} parent=11 // pred_check
          %p492 = pneg %p154
        $region18: #{tpu_custom_call.1} parent=11 // pred_check_branch
          %494 = sbr.rel (%p492) target = $region20
        $region19: #{tpu_custom_call.1} parent=11 // pred_region
          _
        $region20: #{tpu_custom_call.1} parent=11 // pred_fallthru
          _
        // Predicated region
        $region21: #{tpu_custom_call.1} parent=11 // pred_check
          %p495 = pneg %p175
        $region22: #{tpu_custom_call.1} parent=11 // pred_check_branch
          %497 = sbr.rel (%p495) target = $region24
        $region23: #{tpu_custom_call.1} parent=11 // pred_region
          _
        $region24: #{tpu_custom_call.1} parent=11 // pred_fallthru
          _
        // Predicated region
        $region25: #{tpu_custom_call.1} parent=11 // pred_check
          %p498 = pneg %p196
        $region26: #{tpu_custom_call.1} parent=11 // pred_check_branch
          %500 = sbr.rel (%p498) target = $region28
        $region27: #{tpu_custom_call.1} parent=11 // pred_region
          _
        $region28: #{tpu_custom_call.1} parent=11 // pred_fallthru
          _
        // Predicated region
        $region29: #{tpu_custom_call.1} parent=11 // pred_check
          %p501 = pneg %p217
        $region30: #{tpu_custom_call.1} parent=11 // pred_check_branch
          %503 = sbr.rel (%p501) target = $region32
        $region31: #{tpu_custom_call.1} parent=11 // pred_region
          _
        $region32: #{tpu_custom_call.1} parent=11 // pred_fallthru
          _
        // Predicated region
        $region33: #{tpu_custom_call.1} parent=11 // pred_check
          %p504 = pneg %p238
        $region34: #{tpu_custom_call.1} parent=11 // pred_check_branch
          %506 = sbr.rel (%p504) target = $region36
        $region35: #{tpu_custom_call.1} parent=11 // pred_region
          _
        $region36: #{tpu_custom_call.1} parent=11 // pred_fallthru
          _
        // Predicated region
        $region37: #{tpu_custom_call.1} parent=11 // pred_check
          %p507 = pneg %p259
        $region38: #{tpu_custom_call.1} parent=11 // pred_check_branch
          %509 = sbr.rel (%p507) target = $region40
        $region39: #{tpu_custom_call.1} parent=11 // pred_region
          _
        $region40: #{tpu_custom_call.1} parent=11 // pred_fallthru
          _
        // Predicated region
        $region41: #{tpu_custom_call.1} parent=11 // pred_check
          %p510 = pneg %p280
        $region42: #{tpu_custom_call.1} parent=11 // pred_check_branch
          %512 = sbr.rel (%p510) target = $region44
        $region43: #{tpu_custom_call.1} parent=11 // pred_region
          _
        $region44: #{tpu_custom_call.1} parent=11 // pred_fallthru
          _
        // Predicated region
        $region45: #{tpu_custom_call.1} parent=11 // pred_check
          %p513 = pneg %p301
        $region46: #{tpu_custom_call.1} parent=11 // pred_check_branch
          %515 = sbr.rel (%p513) target = $region48
        $region47: #{tpu_custom_call.1} parent=11 // pred_region
          _
        $region48: #{tpu_custom_call.1} parent=11 // pred_fallthru
          _
        // Predicated region
        $region49: #{tpu_custom_call.1} parent=11 // pred_check
          %p516 = pneg %p322
        $region50: #{tpu_custom_call.1} parent=11 // pred_check_branch
          %518 = sbr.rel (%p516) target = $region52
        $region51: #{tpu_custom_call.1} parent=11 // pred_region
          _
        $region52: #{tpu_custom_call.1} parent=11 // pred_fallthru
          _
        // Predicated region
        $region53: #{tpu_custom_call.1} parent=11 // pred_check
          %p519 = pneg %p343
        $region54: #{tpu_custom_call.1} parent=11 // pred_check_branch
          %521 = sbr.rel (%p519) target = $region56
        $region55: #{tpu_custom_call.1} parent=11 // pred_region
          _
        $region56: #{tpu_custom_call.1} parent=11 // pred_fallthru
          _
        // Predicated region
        $region57: #{tpu_custom_call.1} parent=11 // pred_check
          %p522 = pneg %p364
        $region58: #{tpu_custom_call.1} parent=11 // pred_check_branch
          %524 = sbr.rel (%p522) target = $region60
        $region59: #{tpu_custom_call.1} parent=11 // pred_region
          _
        $region60: #{tpu_custom_call.1} parent=11 // pred_fallthru
          _
        // Predicated region
        $region61: #{tpu_custom_call.1} parent=11 // pred_check
          %p525 = pneg %p385
        $region62: #{tpu_custom_call.1} parent=11 // pred_check_branch
          %527 = sbr.rel (%p525) target = $region64
        $region63: #{tpu_custom_call.1} parent=11 // pred_region
          _
        $region64: #{tpu_custom_call.1} parent=11 // pred_fallthru
          _
        // Predicated region
        $region65: #{tpu_custom_call.1} parent=11 // pred_check
          %p528 = pneg %p406
        $region66: #{tpu_custom_call.1} parent=11 // pred_check_branch
          %530 = sbr.rel (%p528) target = $region68
        $region67: #{tpu_custom_call.1} parent=11 // pred_region
          _
        $region68: #{tpu_custom_call.1} parent=11 // pred_fallthru
          _
        // Predicated region
        $region69: #{tpu_custom_call.1} parent=11 // pred_check
          %p531 = pneg %p427
        $region70: #{tpu_custom_call.1} parent=11 // pred_check_branch
          %533 = sbr.rel (%p531) target = $region72
        $region71: #{tpu_custom_call.1} parent=11 // pred_region
          _
        $region72: #{tpu_custom_call.1} parent=11 // pred_fallthru
          _
        // Predicated region
        $region73: #{tpu_custom_call.1} parent=11 // pred_check
          %p534 = pneg %p448
        $region74: #{tpu_custom_call.1} parent=11 // pred_check_branch
          %536 = sbr.rel (%p534) target = $region76
        $region75: #{tpu_custom_call.1} parent=11 // pred_region
          _
        $region76: #{tpu_custom_call.1} parent=11 // pred_fallthru
          _
      $region12: #{tpu_custom_call.1} parent=5 // pred_fallthru
        _
      %p537 = scmp.lt.s32.totalorder %s34, 2
      // Predicated region
      $region77: #{tpu_custom_call.1} parent=5 // pred_check
        %p538 = pneg %p537
      $region78: #{tpu_custom_call.1} parent=5 // pred_check_branch
        %540 = sbr.rel (%p538) target = $region80
      $region79: #{tpu_custom_call.1} parent=5 // pred_region
        // Predicated region
        $region81: #{tpu_custom_call.1} parent=79 // pred_check
          %p541 = pneg %p54
        $region82: #{tpu_custom_call.1} parent=79 // pred_check_branch
          %543 = sbr.rel (%p541) target = $region84
        $region83: #{tpu_custom_call.1} parent=79 // pred_region
          %s544 = sand.u32 %s44, 1
          %s545 = scalar_lea.sflag [#allocation3], %s544
          %s546 = sand.u32 %s44, 1
          %s547 = smul.addr %s546, 8
          %s548 = scalar_lea.vmem [#allocation2], %s547
          %550 = vsyncadd %s545, 0
          %s551 = smul.addr %s34, 8
          %s552 = scalar_lea.hbm %s0, %s551
          %s554 = sshll.u32 %s552, 4
          %s555 = int_to_ptr.hbm [resolvable:$true] %s554
          %s556 = sshll.u32 %s548, 4
          %s557 = int_to_ptr.vmem [resolvable:$true] %s556
          %559 = dma.hbm_to_vmem [thread:$0]  %s555, 128, %s557, %s545
        $region84: #{tpu_custom_call.1} parent=79 // pred_fallthru
          _
        // Predicated region
        $region85: #{tpu_custom_call.1} parent=79 // pred_check
          %p560 = pneg %p80
        $region86: #{tpu_custom_call.1} parent=79 // pred_check_branch
          %562 = sbr.rel (%p560) target = $region88
        $region87: #{tpu_custom_call.1} parent=79 // pred_region
          %s563 = sand.u32 %s34, 1
          %s564 = scalar_lea.sflag [#allocation6], %s563
          %s565 = sand.u32 %s70, 1
          %s566 = smul.addr %s565, 8
          %s567 = scalar_lea.vmem [#allocation5], %s566
          %569 = vsyncadd %s564, 0
          %s570 = smul.addr %s34, 8
          %s571 = scalar_lea.hbm %s1, %s570
          %s573 = sshll.u32 %s571, 4
          %s574 = int_to_ptr.hbm [resolvable:$true] %s573
          %s575 = sshll.u32 %s567, 4
          %s576 = int_to_ptr.vmem [resolvable:$true] %s575
          %578 = dma.hbm_to_vmem [thread:$0]  %s574, 128, %s576, %s564
        $region88: #{tpu_custom_call.1} parent=79 // pred_fallthru
          _
        // Predicated region
        $region89: #{tpu_custom_call.1} parent=79 // pred_check
          %p579 = pneg %p106
        $region90: #{tpu_custom_call.1} parent=79 // pred_check_branch
          %581 = sbr.rel (%p579) target = $region92
        $region91: #{tpu_custom_call.1} parent=79 // pred_region
          %s582 = sand.u32 %s34, 1
          %s583 = scalar_lea.sflag [#allocation6], %s582
          %s584 = sand.u32 %s96, 1
          %s585 = smul.addr %s584, 8
          %s586 = scalar_lea.vmem [#allocation7], %s585
          %588 = vsyncadd %s583, 0
          %s589 = smul.addr %s34, 8
          %s590 = scalar_lea.hbm %s2, %s589
          %s592 = sshll.u32 %s590, 4
          %s593 = int_to_ptr.hbm [resolvable:$true] %s592
          %s594 = sshll.u32 %s586, 4
          %s595 = int_to_ptr.vmem [resolvable:$true] %s594
          %597 = dma.hbm_to_vmem [thread:$0]  %s593, 128, %s595, %s583
        $region92: #{tpu_custom_call.1} parent=79 // pred_fallthru
          _
      $region80: #{tpu_custom_call.1} parent=5 // pred_fallthru
        _
      %p598 = scmp.le.s32.totalorder 1, %s34
      %p599 = scmp.lt.s32.totalorder %s34, 3
      %p600 = pnand %p598, %p599
      %p601 = pneg %p600
      // Predicated region
      $region93: #{tpu_custom_call.1} parent=5 // pred_check
        _
      $region94: #{tpu_custom_call.1} parent=5 // pred_check_branch
        %603 = sbr.rel (%p600) target = $region96
      $region95: #{tpu_custom_call.1} parent=5 // pred_region
        %s604 = ssub.s32 %s34, 1
        %s605 = sand.u32 %s47, 1
        %s606 = scalar_lea.sflag [#allocation3], %s605
        %s607 = sand.u32 %s47, 1
        %s608 = smul.addr %s607, 8
        %s609 = scalar_lea.vmem [#allocation2], %s608
        // Predicated region
        $region97: #{tpu_custom_call.1} parent=95 // pred_check
          %p610 = pneg %p60
        $region98: #{tpu_custom_call.1} parent=95 // pred_check_branch
          %612 = sbr.rel (%p610) target = $region100
        $region99: #{tpu_custom_call.1} parent=95 // pred_region
          %614 = dma.done %s606, 128
        $region100: #{tpu_custom_call.1} parent=95 // pred_fallthru
          _
        %s615 = sand.u32 %s39, 1
        %s616 = scalar_lea.sflag [#allocation6], %s615
        %s617 = sand.u32 %s73, 1
        %s618 = smul.addr %s617, 8
        %s619 = scalar_lea.vmem [#allocation5], %s618
        // Predicated region
        $region101: #{tpu_custom_call.1} parent=95 // pred_check
          %p620 = pneg %p86
        $region102: #{tpu_custom_call.1} parent=95 // pred_check_branch
          %622 = sbr.rel (%p620) target = $region104
        $region103: #{tpu_custom_call.1} parent=95 // pred_region
          %624 = dma.done %s616, 128
        $region104: #{tpu_custom_call.1} parent=95 // pred_fallthru
          _
        %s625 = sand.u32 %s39, 1
        %s626 = scalar_lea.sflag [#allocation6], %s625
        %s627 = sand.u32 %s99, 1
        %s628 = smul.addr %s627, 8
        %s629 = scalar_lea.vmem [#allocation7], %s628
        // Predicated region
        $region105: #{tpu_custom_call.1} parent=95 // pred_check
          %p630 = pneg %p112
        $region106: #{tpu_custom_call.1} parent=95 // pred_check_branch
          %632 = sbr.rel (%p630) target = $region108
        $region107: #{tpu_custom_call.1} parent=95 // pred_region
          %634 = dma.done %s626, 128
        $region108: #{tpu_custom_call.1} parent=95 // pred_fallthru
          _
        %s635 = sand.u32 %s47, 1
        %s636 = scalar_lea.sflag [#allocation3], %s635
        %s637 = sand.u32 %s47, 1
        %s638 = smul.addr %s637, 8
        %s639 = scalar_lea.vmem [#allocation2], %s638
        %p640 = pneg %p60
        %p641 = pneg %p57
        %s642 = sand.u32 %s39, 1
        %s643 = scalar_lea.sflag [#allocation6], %s642
        %s644 = sand.u32 %s73, 1
        %s645 = smul.addr %s644, 8
        %s646 = scalar_lea.vmem [#allocation5], %s645
        %p647 = pneg %p86
        %p648 = pneg %p83
        %s649 = sand.u32 %s39, 1
        %s650 = scalar_lea.sflag [#allocation6], %s649
        %s651 = sand.u32 %s99, 1
        %s652 = smul.addr %s651, 8
        %s653 = scalar_lea.vmem [#allocation7], %s652
        %p654 = pneg %p112
        %p655 = pneg %p109
        %p656 = pneg %p133
        %p657 = pneg %p130
        %p658 = pneg %p154
        %p659 = pneg %p151
        %p660 = pneg %p175
        %p661 = pneg %p172
        %p662 = pneg %p196
        %p663 = pneg %p193
        %p664 = pneg %p217
        %p665 = pneg %p214
        %p666 = pneg %p238
        %p667 = pneg %p235
        %p668 = pneg %p259
        %p669 = pneg %p256
        %p670 = pneg %p280
        %p671 = pneg %p277
        %p672 = pneg %p301
        %p673 = pneg %p298
        %p674 = pneg %p322
        %p675 = pneg %p319
        %p676 = pneg %p343
        %p677 = pneg %p340
        %p678 = pneg %p364
        %p679 = pneg %p361
        %p680 = pneg %p385
        %p681 = pneg %p382
        %p682 = pneg %p406
        %p683 = pneg %p403
        %p684 = pneg %p427
        %p685 = pneg %p424
        %p686 = pneg %p448
        %p687 = pneg %p445
        %p688 = pneg %p474
        %p689 = pneg %p471
        %s690 = sand.u32 %s461, 1
        %s691 = scalar_lea.sflag [#allocation4], %s690
        %s692 = sand.u32 %s461, 1
        %s693 = smul.addr %s692, 8
        %s694 = scalar_lea.vmem [#allocation8], %s693
        %v695 = vld [vmem:[%s609] sm:$0xff]
        %v696 = vld [vmem:[%s619] sm:$0xff]
        %v697 = vld [vmem:[%s629] sm:$0xff]
        %v698 = vld [vmem:[%s3] sm:$0xff]
        %v699 = vld [vmem:[%s3 + $0x8] sm:$0xff]
        %v700 = vld [vmem:[%s3 + $0x10] sm:$0xff]
        %v701 = vld [vmem:[%s3 + $0x18] sm:$0xff]
        %v702 = vld [vmem:[%s4] sm:$0x1]
        %v704 = vperm.slane %v702, 0
        %vm706 = vcmask 261120
        %v708 = vsel %vm706, %v695, 0
        %710 = vmatpush.msra.mxu0 0.0
        %711 = vmatpush.msra.mxu0 0.0
        %712 = vmatpush.msra.mxu0 0.0
        %713 = vmatpush.msra.mxu0 0.0
        %714 = vmatpush.msra.mxu0 0.0
        %715 = vmatpush.msra.mxu0 0.0
        %716 = vmatpush.msra.mxu0 0.0
        %717 = vmatpush.msra.mxu0 0.0
        %718 = vmatpush.msra.mxu0 0.0
        %719 = vmatpush.msra.mxu0 0.0
        %720 = vmatpush.msra.mxu0 0.0
        %721 = vmatpush.msra.mxu0 0.0
        %722 = vmatpush.msra.mxu0 %v701
        %723 = vmatpush.msra.mxu0 %v700
        %724 = vmatpush.msra.mxu0 %v699
        %725 = vmatpush.msra.mxu0 %v698
        %726 = vmatmul.f32.gmra.mxu0 %v708
        %v727 = vpop.f32.mrf.mxu0
        %v728 = vadd.f32 %v704, %v727
        %729 = vdwg.mxu0
        %v730 = vld [vmem:[%s5] sm:$0xff]
        %v731 = vld [vmem:[%s5 + $0x8] sm:$0xff]
        %v732 = vld [vmem:[%s5 + $0x10] sm:$0xff]
        %v733 = vld [vmem:[%s5 + $0x18] sm:$0xff]
        %v734 = vld [vmem:[%s6] sm:$0x1]
        %v736 = vperm.slane %v734, 0
        %v739 = vsel %vm706, %v696, 0
        %741 = vmatpush.msra.mxu0 0.0
        %742 = vmatpush.msra.mxu0 0.0
        %743 = vmatpush.msra.mxu0 0.0
        %744 = vmatpush.msra.mxu0 0.0
        %745 = vmatpush.msra.mxu0 0.0
        %746 = vmatpush.msra.mxu0 0.0
        %747 = vmatpush.msra.mxu0 0.0
        %748 = vmatpush.msra.mxu0 0.0
        %749 = vmatpush.msra.mxu0 0.0
        %750 = vmatpush.msra.mxu0 0.0
        %751 = vmatpush.msra.mxu0 0.0
        %752 = vmatpush.msra.mxu0 0.0
        %753 = vmatpush.msra.mxu0 %v733
        %754 = vmatpush.msra.mxu0 %v732
        %755 = vmatpush.msra.mxu0 %v731
        %756 = vmatpush.msra.mxu0 %v730
        %757 = vmatmul.f32.gmra.mxu0 %v739
        %v758 = vpop.f32.mrf.mxu0
        %v759 = vadd.f32 %v736, %v758
        %760 = vdwg.mxu0
        %v761 = vld [vmem:[%s7] sm:$0xff]
        %v762 = vld [vmem:[%s7 + $0x8] sm:$0xff]
        %v763 = vld [vmem:[%s7 + $0x10] sm:$0xff]
        %v764 = vld [vmem:[%s7 + $0x18] sm:$0xff]
        %v765 = vld [vmem:[%s8] sm:$0x1]
        %v767 = vperm.slane %v765, 0
        %v770 = vsel %vm706, %v697, 0
        %772 = vmatpush.msra.mxu0 0.0
        %773 = vmatpush.msra.mxu0 0.0
        %774 = vmatpush.msra.mxu0 0.0
        %775 = vmatpush.msra.mxu0 0.0
        %776 = vmatpush.msra.mxu0 0.0
        %777 = vmatpush.msra.mxu0 0.0
        %778 = vmatpush.msra.mxu0 0.0
        %779 = vmatpush.msra.mxu0 0.0
        %780 = vmatpush.msra.mxu0 0.0
        %781 = vmatpush.msra.mxu0 0.0
        %782 = vmatpush.msra.mxu0 0.0
        %783 = vmatpush.msra.mxu0 0.0
        %784 = vmatpush.msra.mxu0 %v764
        %785 = vmatpush.msra.mxu0 %v763
        %786 = vmatpush.msra.mxu0 %v762
        %787 = vmatpush.msra.mxu0 %v761
        %788 = vmatmul.f32.gmra.mxu0 %v770
        %v789 = vpop.f32.mrf.mxu0
        %v790 = vadd.f32 %v767, %v789
        %791 = vdwg.mxu0
        %v792 = vld [vmem:[%s9] sm:$0xff]
        %v793 = vld [vmem:[%s9 + $0x8] sm:$0xff]
        %v794 = vld [vmem:[%s9 + $0x10] sm:$0xff]
        %v795 = vld [vmem:[%s9 + $0x18] sm:$0xff]
        %vm796 = vcmask 31744
        %v798 = vsel %vm796, %v728, 0
        %v801 = vsel %vm796, %v759, 0
        %803 = vmatpush.xpose.msra.mxu0 0.0
        %804 = vmatpush.xpose.msra.mxu0 0.0
        %805 = vmatpush.xpose.msra.mxu0 0.0
        %806 = vmatpush.xpose.msra.mxu0 0.0
        %807 = vmatpush.xpose.msra.mxu0 0.0
        %808 = vmatpush.xpose.msra.mxu0 0.0
        %809 = vmatpush.xpose.msra.mxu0 0.0
        %810 = vmatpush.xpose.msra.mxu0 0.0
        %811 = vmatpush.xpose.msra.mxu0 0.0
        %812 = vmatpush.xpose.msra.mxu0 0.0
        %813 = vmatpush.xpose.msra.mxu0 0.0
        %814 = vmatpush.xpose.msra.mxu0 0.0
        %815 = vmatpush.xpose.msra.mxu0 0.0
        %816 = vmatpush.xpose.msra.mxu0 0.0
        %817 = vmatpush.xpose.msra.mxu0 0.0
        %818 = vmatpush.xpose.msra.mxu0 %v801
        %819 = vmatmul.f32.gmra.mxu0 %v798
        %v820 = vpop.f32.mrf.mxu0
        %v821 = vadd.f32 0.0, %v820
        %822 = vdwg.mxu0
        %vm823 = vcmask 64512
        %v824 = vsel %vm823, %v821, -inf
        %825 = vmax.xlane.f32.xlu0 %v824
        %v826 = vpop.xlane.xlu0 %825
        %v827 = vsub.f32 %v821, %v826
        %v828 = vmul.f32 %v827, 1.442695
        %v829 = vpow.pop %v828
        %v830 = vsel %vm823, %v829, 0.0
        %831 = vadd.xlane.f32.xlu0 %v830
        %v832 = vpop.xlane.xlu0 %831
        %v833 = vrcp.pop %v832
        %v834 = vmul.f32 %v832, %v833
        %v835 = vsub.f32 1.0, %v834
        %v836 = vmul.f32 %v833, %v835
        %v837 = vadd.f32 %v833, %v836
        %vm838 = vweird.f32 %v832
        %vm839 = vweird.f32 %v833
        %vm840 = vmor %vm838, %vm839
        %v841 = vsel %vm840, %v833, %v837
        %v842 = vand.u32 2147483647, %v832
        %vm843 = vcmp.eq.f32.partialorder %v842, 8.507059e+37
        %v844 = vand.u32 %v832, 2147483648
        %v845 = vor.u32 1.1754944e-38, %v844
        %v846 = vsel %vm843, %v845, %v841
        %v847 = vmul.f32 %v829, %v846
        %v849 = vsel %vm823, %v847, 0
        %851 = vmatpush.msra.mxu0 0.0
        %852 = vmatpush.msra.mxu0 0.0
        %853 = vmatpush.msra.mxu0 0.0
        %854 = vmatpush.msra.mxu0 0.0
        %855 = vmatpush.msra.mxu0 0.0
        %856 = vmatpush.msra.mxu0 0.0
        %857 = vmatpush.msra.mxu0 0.0
        %858 = vmatpush.msra.mxu0 0.0
        %859 = vmatpush.msra.mxu0 0.0
        %860 = vmatpush.msra.mxu0 0.0
        %861 = vmatpush.msra.mxu0 0.0
        %862 = vmatpush.msra.mxu0 0.0
        %863 = vmatpush.msra.mxu0 0.0
        %864 = vmatpush.msra.mxu0 0.0
        %865 = vmatpush.msra.mxu0 0.0
        %866 = vmatpush.msra.mxu0 %v790
        %867 = vmatmul.f32.gmra.mxu0 %v849
        %v868 = vpop.f32.mrf.mxu0
        %v869 = vadd.f32 0.0, %v868
        %870 = vdwg.mxu0
        %871 = vrot.lane.b32.xlu0 %v728, 124
        %v872 = vpop.permute.xlu0 %871
        %873 = vrot.lane.b32.xlu0 %v759, 124
        %v874 = vpop.permute.xlu0 %873
        %v875 = vsel %vm796, %v872, 0
        %v877 = vsel %vm796, %v874, 0
        %879 = vmatpush.xpose.msra.mxu0 0.0
        %880 = vmatpush.xpose.msra.mxu0 0.0
        %881 = vmatpush.xpose.msra.mxu0 0.0
        %882 = vmatpush.xpose.msra.mxu0 0.0
        %883 = vmatpush.xpose.msra.mxu0 0.0
        %884 = vmatpush.xpose.msra.mxu0 0.0
        %885 = vmatpush.xpose.msra.mxu0 0.0
        %886 = vmatpush.xpose.msra.mxu0 0.0
        %887 = vmatpush.xpose.msra.mxu0 0.0
        %888 = vmatpush.xpose.msra.mxu0 0.0
        %889 = vmatpush.xpose.msra.mxu0 0.0
        %890 = vmatpush.xpose.msra.mxu0 0.0
        %891 = vmatpush.xpose.msra.mxu0 0.0
        %892 = vmatpush.xpose.msra.mxu0 0.0
        %893 = vmatpush.xpose.msra.mxu0 0.0
        %894 = vmatpush.xpose.msra.mxu0 %v877
        %895 = vmatmul.f32.gmra.mxu0 %v875
        %v896 = vpop.f32.mrf.mxu0
        %v897 = vadd.f32 0.0, %v896
        %898 = vdwg.mxu0
        %v899 = vsel %vm823, %v897, -inf
        %900 = vmax.xlane.f32.xlu0 %v899
        %v901 = vpop.xlane.xlu0 %900
        %v902 = vsub.f32 %v897, %v901
        %v903 = vmul.f32 %v902, 1.442695
        %v904 = vpow.pop %v903
        %v905 = vsel %vm823, %v904, 0.0
        %906 = vadd.xlane.f32.xlu0 %v905
        %v907 = vpop.xlane.xlu0 %906
        %v908 = vrcp.pop %v907
        %v909 = vmul.f32 %v907, %v908
        %v910 = vsub.f32 1.0, %v909
        %v911 = vmul.f32 %v908, %v910
        %v912 = vadd.f32 %v908, %v911
        %vm913 = vweird.f32 %v907
        %vm914 = vweird.f32 %v908
        %vm915 = vmor %vm913, %vm914
        %v916 = vsel %vm915, %v908, %v912
        %v917 = vand.u32 2147483647, %v907
        %vm918 = vcmp.eq.f32.partialorder %v917, 8.507059e+37
        %v919 = vand.u32 %v907, 2147483648
        %v920 = vor.u32 1.1754944e-38, %v919
        %v921 = vsel %vm918, %v920, %v916
        %v922 = vmul.f32 %v904, %v921
        %924 = vrot.lane.b32.xlu0 %v790, 124
        %v925 = vpop.permute.xlu0 %924
        %v928 = vsel %vm823, %v922, 0
        %930 = vmatpush.msra.mxu0 0.0
        %931 = vmatpush.msra.mxu0 0.0
        %932 = vmatpush.msra.mxu0 0.0
        %933 = vmatpush.msra.mxu0 0.0
        %934 = vmatpush.msra.mxu0 0.0
        %935 = vmatpush.msra.mxu0 0.0
        %936 = vmatpush.msra.mxu0 0.0
        %937 = vmatpush.msra.mxu0 0.0
        %938 = vmatpush.msra.mxu0 0.0
        %939 = vmatpush.msra.mxu0 0.0
        %940 = vmatpush.msra.mxu0 0.0
        %941 = vmatpush.msra.mxu0 0.0
        %942 = vmatpush.msra.mxu0 0.0
        %943 = vmatpush.msra.mxu0 0.0
        %944 = vmatpush.msra.mxu0 0.0
        %945 = vmatpush.msra.mxu0 %v925
        %946 = vmatmul.f32.gmra.mxu0 %v928
        %v947 = vpop.f32.mrf.mxu0
        %v948 = vadd.f32 0.0, %v947
        %949 = vdwg.mxu0
        %v951 = vrot.slane %v792, 4
        %v953 = vsel %vm796, %v948, 0
        %vm955 = vcmask 1043456
        %v956 = vsel %vm955, %v951, 0
        %958 = vmatpush.msra.mxu0 0.0
        %959 = vmatpush.msra.mxu0 0.0
        %960 = vmatpush.msra.mxu0 0.0
        %961 = vmatpush.msra.mxu0 0.0
        %962 = vmatpush.msra.mxu0 0.0
        %963 = vmatpush.msra.mxu0 0.0
        %964 = vmatpush.msra.mxu0 0.0
        %965 = vmatpush.msra.mxu0 0.0
        %966 = vmatpush.msra.mxu0 0.0
        %967 = vmatpush.msra.mxu0 0.0
        %968 = vmatpush.msra.mxu0 0.0
        %969 = vmatpush.msra.mxu0 0.0
        %970 = vmatpush.msra.mxu0 0.0
        %971 = vmatpush.msra.mxu0 0.0
        %972 = vmatpush.msra.mxu0 0.0
        %973 = vmatpush.msra.mxu0 %v956
        %974 = vmatmul.f32.gmra.mxu0 %v953
        %v975 = vpop.f32.mrf.mxu0
        %v976 = vadd.f32 0.0, %v975
        %977 = vdwg.mxu0
        %v979 = vsel %vm796, %v869, 0
        %v981 = vsel %vm955, %v792, 0
        %983 = vmatpush.msra.mxu0 0.0
        %984 = vmatpush.msra.mxu0 0.0
        %985 = vmatpush.msra.mxu0 0.0
        %986 = vmatpush.msra.mxu0 0.0
        %987 = vmatpush.msra.mxu0 0.0
        %988 = vmatpush.msra.mxu0 0.0
        %989 = vmatpush.msra.mxu0 0.0
        %990 = vmatpush.msra.mxu0 0.0
        %991 = vmatpush.msra.mxu0 0.0
        %992 = vmatpush.msra.mxu0 0.0
        %993 = vmatpush.msra.mxu0 0.0
        %994 = vmatpush.msra.mxu0 0.0
        %995 = vmatpush.msra.mxu0 0.0
        %996 = vmatpush.msra.mxu0 0.0
        %997 = vmatpush.msra.mxu0 0.0
        %998 = vmatpush.msra.mxu0 %v981
        %999 = vmatmul.f32.gmra.mxu0 %v979
        %v1000 = vpop.f32.mrf.mxu0
        %v1001 = vadd.f32 %v976, %v1000
        %1002 = vdwg.mxu0
        %1003 = vrot.lane.b32.xlu0 %v728, 120
        %v1004 = vpop.permute.xlu0 %1003
        %1005 = vrot.lane.b32.xlu0 %v759, 120
        %v1006 = vpop.permute.xlu0 %1005
        %v1007 = vsel %vm796, %v1004, 0
        %v1009 = vsel %vm796, %v1006, 0
        %1011 = vmatpush.xpose.msra.mxu0 0.0
        %1012 = vmatpush.xpose.msra.mxu0 0.0
        %1013 = vmatpush.xpose.msra.mxu0 0.0
        %1014 = vmatpush.xpose.msra.mxu0 0.0
        %1015 = vmatpush.xpose.msra.mxu0 0.0
        %1016 = vmatpush.xpose.msra.mxu0 0.0
        %1017 = vmatpush.xpose.msra.mxu0 0.0
        %1018 = vmatpush.xpose.msra.mxu0 0.0
        %1019 = vmatpush.xpose.msra.mxu0 0.0
        %1020 = vmatpush.xpose.msra.mxu0 0.0
        %1021 = vmatpush.xpose.msra.mxu0 0.0
        %1022 = vmatpush.xpose.msra.mxu0 0.0
        %1023 = vmatpush.xpose.msra.mxu0 0.0
        %1024 = vmatpush.xpose.msra.mxu0 0.0
        %1025 = vmatpush.xpose.msra.mxu0 0.0
        %1026 = vmatpush.xpose.msra.mxu0 %v1009
        %1027 = vmatmul.f32.gmra.mxu0 %v1007
        %v1028 = vpop.f32.mrf.mxu0
        %v1029 = vadd.f32 0.0, %v1028
        %1030 = vdwg.mxu0
        %v1031 = vsel %vm823, %v1029, -inf
        %1032 = vmax.xlane.f32.xlu0 %v1031
        %v1033 = vpop.xlane.xlu0 %1032
        %v1034 = vsub.f32 %v1029, %v1033
        %v1035 = vmul.f32 %v1034, 1.442695
        %v1036 = vpow.pop %v1035
        %v1037 = vsel %vm823, %v1036, 0.0
        %1038 = vadd.xlane.f32.xlu0 %v1037
        %v1039 = vpop.xlane.xlu0 %1038
        %v1040 = vrcp.pop %v1039
        %v1041 = vmul.f32 %v1039, %v1040
        %v1042 = vsub.f32 1.0, %v1041
        %v1043 = vmul.f32 %v1040, %v1042
        %v1044 = vadd.f32 %v1040, %v1043
        %vm1045 = vweird.f32 %v1039
        %vm1046 = vweird.f32 %v1040
        %vm1047 = vmor %vm1045, %vm1046
        %v1048 = vsel %vm1047, %v1040, %v1044
        %v1049 = vand.u32 2147483647, %v1039
        %vm1050 = vcmp.eq.f32.partialorder %v1049, 8.507059e+37
        %v1051 = vand.u32 %v1039, 2147483648
        %v1052 = vor.u32 1.1754944e-38, %v1051
        %v1053 = vsel %vm1050, %v1052, %v1048
        %v1054 = vmul.f32 %v1036, %v1053
        %1055 = vrot.lane.b32.xlu0 %v790, 120
        %v1056 = vpop.permute.xlu0 %1055
        %v1059 = vsel %vm823, %v1054, 0
        %1061 = vmatpush.msra.mxu0 0.0
        %1062 = vmatpush.msra.mxu0 0.0
        %1063 = vmatpush.msra.mxu0 0.0
        %1064 = vmatpush.msra.mxu0 0.0
        %1065 = vmatpush.msra.mxu0 0.0
        %1066 = vmatpush.msra.mxu0 0.0
        %1067 = vmatpush.msra.mxu0 0.0
        %1068 = vmatpush.msra.mxu0 0.0
        %1069 = vmatpush.msra.mxu0 0.0
        %1070 = vmatpush.msra.mxu0 0.0
        %1071 = vmatpush.msra.mxu0 0.0
        %1072 = vmatpush.msra.mxu0 0.0
        %1073 = vmatpush.msra.mxu0 0.0
        %1074 = vmatpush.msra.mxu0 0.0
        %1075 = vmatpush.msra.mxu0 0.0
        %1076 = vmatpush.msra.mxu0 %v1056
        %1077 = vmatmul.f32.gmra.mxu0 %v1059
        %v1078 = vpop.f32.mrf.mxu0
        %v1079 = vadd.f32 0.0, %v1078
        %1080 = vdwg.mxu0
        %v1082 = vsel %vm796, %v1079, 0
        %v1085 = vsel %vm955, %v793, 0
        %1087 = vmatpush.msra.mxu0 0.0
        %1088 = vmatpush.msra.mxu0 0.0
        %1089 = vmatpush.msra.mxu0 0.0
        %1090 = vmatpush.msra.mxu0 0.0
        %1091 = vmatpush.msra.mxu0 0.0
        %1092 = vmatpush.msra.mxu0 0.0
        %1093 = vmatpush.msra.mxu0 0.0
        %1094 = vmatpush.msra.mxu0 0.0
        %1095 = vmatpush.msra.mxu0 0.0
        %1096 = vmatpush.msra.mxu0 0.0
        %1097 = vmatpush.msra.mxu0 0.0
        %1098 = vmatpush.msra.mxu0 0.0
        %1099 = vmatpush.msra.mxu0 0.0
        %1100 = vmatpush.msra.mxu0 0.0
        %1101 = vmatpush.msra.mxu0 0.0
        %1102 = vmatpush.msra.mxu0 %v1085
        %1103 = vmatmul.f32.gmra.mxu0 %v1082
        %v1104 = vpop.f32.mrf.mxu0
        %v1105 = vadd.f32 0.0, %v1104
        %1106 = vdwg.mxu0
        %v1107 = vadd.f32 %v1001, %v1105
        %1108 = vrot.lane.b32.xlu0 %v728, 116
        %v1109 = vpop.permute.xlu0 %1108
        %1110 = vrot.lane.b32.xlu0 %v759, 116
        %v1111 = vpop.permute.xlu0 %1110
        %v1112 = vsel %vm796, %v1109, 0
        %v1114 = vsel %vm796, %v1111, 0
        %1116 = vmatpush.xpose.msra.mxu0 0.0
        %1117 = vmatpush.xpose.msra.mxu0 0.0
        %1118 = vmatpush.xpose.msra.mxu0 0.0
        %1119 = vmatpush.xpose.msra.mxu0 0.0
        %1120 = vmatpush.xpose.msra.mxu0 0.0
        %1121 = vmatpush.xpose.msra.mxu0 0.0
        %1122 = vmatpush.xpose.msra.mxu0 0.0
        %1123 = vmatpush.xpose.msra.mxu0 0.0
        %1124 = vmatpush.xpose.msra.mxu0 0.0
        %1125 = vmatpush.xpose.msra.mxu0 0.0
        %1126 = vmatpush.xpose.msra.mxu0 0.0
        %1127 = vmatpush.xpose.msra.mxu0 0.0
        %1128 = vmatpush.xpose.msra.mxu0 0.0
        %1129 = vmatpush.xpose.msra.mxu0 0.0
        %1130 = vmatpush.xpose.msra.mxu0 0.0
        %1131 = vmatpush.xpose.msra.mxu0 %v1114
        %1132 = vmatmul.f32.gmra.mxu0 %v1112
        %v1133 = vpop.f32.mrf.mxu0
        %v1134 = vadd.f32 0.0, %v1133
        %1135 = vdwg.mxu0
        %v1136 = vsel %vm823, %v1134, -inf
        %1137 = vmax.xlane.f32.xlu0 %v1136
        %v1138 = vpop.xlane.xlu0 %1137
        %v1139 = vsub.f32 %v1134, %v1138
        %v1140 = vmul.f32 %v1139, 1.442695
        %v1141 = vpow.pop %v1140
        %v1142 = vsel %vm823, %v1141, 0.0
        %1143 = vadd.xlane.f32.xlu0 %v1142
        %v1144 = vpop.xlane.xlu0 %1143
        %v1145 = vrcp.pop %v1144
        %v1146 = vmul.f32 %v1144, %v1145
        %v1147 = vsub.f32 1.0, %v1146
        %v1148 = vmul.f32 %v1145, %v1147
        %v1149 = vadd.f32 %v1145, %v1148
        %vm1150 = vweird.f32 %v1144
        %vm1151 = vweird.f32 %v1145
        %vm1152 = vmor %vm1150, %vm1151
        %v1153 = vsel %vm1152, %v1145, %v1149
        %v1154 = vand.u32 2147483647, %v1144
        %vm1155 = vcmp.eq.f32.partialorder %v1154, 8.507059e+37
        %v1156 = vand.u32 %v1144, 2147483648
        %v1157 = vor.u32 1.1754944e-38, %v1156
        %v1158 = vsel %vm1155, %v1157, %v1153
        %v1159 = vmul.f32 %v1141, %v1158
        %1160 = vrot.lane.b32.xlu0 %v790, 116
        %v1161 = vpop.permute.xlu0 %1160
        %v1164 = vsel %vm823, %v1159, 0
        %1166 = vmatpush.msra.mxu0 0.0
        %1167 = vmatpush.msra.mxu0 0.0
        %1168 = vmatpush.msra.mxu0 0.0
        %1169 = vmatpush.msra.mxu0 0.0
        %1170 = vmatpush.msra.mxu0 0.0
        %1171 = vmatpush.msra.mxu0 0.0
        %1172 = vmatpush.msra.mxu0 0.0
        %1173 = vmatpush.msra.mxu0 0.0
        %1174 = vmatpush.msra.mxu0 0.0
        %1175 = vmatpush.msra.mxu0 0.0
        %1176 = vmatpush.msra.mxu0 0.0
        %1177 = vmatpush.msra.mxu0 0.0
        %1178 = vmatpush.msra.mxu0 0.0
        %1179 = vmatpush.msra.mxu0 0.0
        %1180 = vmatpush.msra.mxu0 0.0
        %1181 = vmatpush.msra.mxu0 %v1161
        %1182 = vmatmul.f32.gmra.mxu0 %v1164
        %v1183 = vpop.f32.mrf.mxu0
        %v1184 = vadd.f32 0.0, %v1183
        %1185 = vdwg.mxu0
        %v1186 = vrot.slane %v793, 4
        %v1188 = vsel %vm796, %v1184, 0
        %v1190 = vsel %vm955, %v1186, 0
        %1192 = vmatpush.msra.mxu0 0.0
        %1193 = vmatpush.msra.mxu0 0.0
        %1194 = vmatpush.msra.mxu0 0.0
        %1195 = vmatpush.msra.mxu0 0.0
        %1196 = vmatpush.msra.mxu0 0.0
        %1197 = vmatpush.msra.mxu0 0.0
        %1198 = vmatpush.msra.mxu0 0.0
        %1199 = vmatpush.msra.mxu0 0.0
        %1200 = vmatpush.msra.mxu0 0.0
        %1201 = vmatpush.msra.mxu0 0.0
        %1202 = vmatpush.msra.mxu0 0.0
        %1203 = vmatpush.msra.mxu0 0.0
        %1204 = vmatpush.msra.mxu0 0.0
        %1205 = vmatpush.msra.mxu0 0.0
        %1206 = vmatpush.msra.mxu0 0.0
        %1207 = vmatpush.msra.mxu0 %v1190
        %1208 = vmatmul.f32.gmra.mxu0 %v1188
        %v1209 = vpop.f32.mrf.mxu0
        %v1210 = vadd.f32 0.0, %v1209
        %1211 = vdwg.mxu0
        %v1212 = vadd.f32 %v1107, %v1210
        %1213 = vrot.lane.b32.xlu0 %v728, 112
        %v1214 = vpop.permute.xlu0 %1213
        %1215 = vrot.lane.b32.xlu0 %v759, 112
        %v1216 = vpop.permute.xlu0 %1215
        %v1217 = vsel %vm796, %v1214, 0
        %v1219 = vsel %vm796, %v1216, 0
        %1221 = vmatpush.xpose.msra.mxu0 0.0
        %1222 = vmatpush.xpose.msra.mxu0 0.0
        %1223 = vmatpush.xpose.msra.mxu0 0.0
        %1224 = vmatpush.xpose.msra.mxu0 0.0
        %1225 = vmatpush.xpose.msra.mxu0 0.0
        %1226 = vmatpush.xpose.msra.mxu0 0.0
        %1227 = vmatpush.xpose.msra.mxu0 0.0
        %1228 = vmatpush.xpose.msra.mxu0 0.0
        %1229 = vmatpush.xpose.msra.mxu0 0.0
        %1230 = vmatpush.xpose.msra.mxu0 0.0
        %1231 = vmatpush.xpose.msra.mxu0 0.0
        %1232 = vmatpush.xpose.msra.mxu0 0.0
        %1233 = vmatpush.xpose.msra.mxu0 0.0
        %1234 = vmatpush.xpose.msra.mxu0 0.0
        %1235 = vmatpush.xpose.msra.mxu0 0.0
        %1236 = vmatpush.xpose.msra.mxu0 %v1219
        %1237 = vmatmul.f32.gmra.mxu0 %v1217
        %v1238 = vpop.f32.mrf.mxu0
        %v1239 = vadd.f32 0.0, %v1238
        %1240 = vdwg.mxu0
        %v1241 = vsel %vm823, %v1239, -inf
        %1242 = vmax.xlane.f32.xlu0 %v1241
        %v1243 = vpop.xlane.xlu0 %1242
        %v1244 = vsub.f32 %v1239, %v1243
        %v1245 = vmul.f32 %v1244, 1.442695
        %v1246 = vpow.pop %v1245
        %v1247 = vsel %vm823, %v1246, 0.0
        %1248 = vadd.xlane.f32.xlu0 %v1247
        %v1249 = vpop.xlane.xlu0 %1248
        %v1250 = vrcp.pop %v1249
        %v1251 = vmul.f32 %v1249, %v1250
        %v1252 = vsub.f32 1.0, %v1251
        %v1253 = vmul.f32 %v1250, %v1252
        %v1254 = vadd.f32 %v1250, %v1253
        %vm1255 = vweird.f32 %v1249
        %vm1256 = vweird.f32 %v1250
        %vm1257 = vmor %vm1255, %vm1256
        %v1258 = vsel %vm1257, %v1250, %v1254
        %v1259 = vand.u32 2147483647, %v1249
        %vm1260 = vcmp.eq.f32.partialorder %v1259, 8.507059e+37
        %v1261 = vand.u32 %v1249, 2147483648
        %v1262 = vor.u32 1.1754944e-38, %v1261
        %v1263 = vsel %vm1260, %v1262, %v1258
        %v1264 = vmul.f32 %v1246, %v1263
        %1265 = vrot.lane.b32.xlu0 %v790, 112
        %v1266 = vpop.permute.xlu0 %1265
        %v1269 = vsel %vm823, %v1264, 0
        %1271 = vmatpush.msra.mxu0 0.0
        %1272 = vmatpush.msra.mxu0 0.0
        %1273 = vmatpush.msra.mxu0 0.0
        %1274 = vmatpush.msra.mxu0 0.0
        %1275 = vmatpush.msra.mxu0 0.0
        %1276 = vmatpush.msra.mxu0 0.0
        %1277 = vmatpush.msra.mxu0 0.0
        %1278 = vmatpush.msra.mxu0 0.0
        %1279 = vmatpush.msra.mxu0 0.0
        %1280 = vmatpush.msra.mxu0 0.0
        %1281 = vmatpush.msra.mxu0 0.0
        %1282 = vmatpush.msra.mxu0 0.0
        %1283 = vmatpush.msra.mxu0 0.0
        %1284 = vmatpush.msra.mxu0 0.0
        %1285 = vmatpush.msra.mxu0 0.0
        %1286 = vmatpush.msra.mxu0 %v1266
        %1287 = vmatmul.f32.gmra.mxu0 %v1269
        %v1288 = vpop.f32.mrf.mxu0
        %v1289 = vadd.f32 0.0, %v1288
        %1290 = vdwg.mxu0
        %v1292 = vsel %vm796, %v1289, 0
        %v1295 = vsel %vm955, %v794, 0
        %1297 = vmatpush.msra.mxu0 0.0
        %1298 = vmatpush.msra.mxu0 0.0
        %1299 = vmatpush.msra.mxu0 0.0
        %1300 = vmatpush.msra.mxu0 0.0
        %1301 = vmatpush.msra.mxu0 0.0
        %1302 = vmatpush.msra.mxu0 0.0
        %1303 = vmatpush.msra.mxu0 0.0
        %1304 = vmatpush.msra.mxu0 0.0
        %1305 = vmatpush.msra.mxu0 0.0
        %1306 = vmatpush.msra.mxu0 0.0
        %1307 = vmatpush.msra.mxu0 0.0
        %1308 = vmatpush.msra.mxu0 0.0
        %1309 = vmatpush.msra.mxu0 0.0
        %1310 = vmatpush.msra.mxu0 0.0
        %1311 = vmatpush.msra.mxu0 0.0
        %1312 = vmatpush.msra.mxu0 %v1295
        %1313 = vmatmul.f32.gmra.mxu0 %v1292
        %v1314 = vpop.f32.mrf.mxu0
        %v1315 = vadd.f32 0.0, %v1314
        %1316 = vdwg.mxu0
        %v1317 = vadd.f32 %v1212, %v1315
        %1318 = vrot.lane.b32.xlu0 %v728, 108
        %v1319 = vpop.permute.xlu0 %1318
        %1320 = vrot.lane.b32.xlu0 %v759, 108
        %v1321 = vpop.permute.xlu0 %1320
        %v1322 = vsel %vm796, %v1319, 0
        %v1324 = vsel %vm796, %v1321, 0
        %1326 = vmatpush.xpose.msra.mxu0 0.0
        %1327 = vmatpush.xpose.msra.mxu0 0.0
        %1328 = vmatpush.xpose.msra.mxu0 0.0
        %1329 = vmatpush.xpose.msra.mxu0 0.0
        %1330 = vmatpush.xpose.msra.mxu0 0.0
        %1331 = vmatpush.xpose.msra.mxu0 0.0
        %1332 = vmatpush.xpose.msra.mxu0 0.0
        %1333 = vmatpush.xpose.msra.mxu0 0.0
        %1334 = vmatpush.xpose.msra.mxu0 0.0
        %1335 = vmatpush.xpose.msra.mxu0 0.0
        %1336 = vmatpush.xpose.msra.mxu0 0.0
        %1337 = vmatpush.xpose.msra.mxu0 0.0
        %1338 = vmatpush.xpose.msra.mxu0 0.0
        %1339 = vmatpush.xpose.msra.mxu0 0.0
        %1340 = vmatpush.xpose.msra.mxu0 0.0
        %1341 = vmatpush.xpose.msra.mxu0 %v1324
        %1342 = vmatmul.f32.gmra.mxu0 %v1322
        %v1343 = vpop.f32.mrf.mxu0
        %v1344 = vadd.f32 0.0, %v1343
        %1345 = vdwg.mxu0
        %v1346 = vsel %vm823, %v1344, -inf
        %1347 = vmax.xlane.f32.xlu0 %v1346
        %v1348 = vpop.xlane.xlu0 %1347
        %v1349 = vsub.f32 %v1344, %v1348
        %v1350 = vmul.f32 %v1349, 1.442695
        %v1351 = vpow.pop %v1350
        %v1352 = vsel %vm823, %v1351, 0.0
        %1353 = vadd.xlane.f32.xlu0 %v1352
        %v1354 = vpop.xlane.xlu0 %1353
        %v1355 = vrcp.pop %v1354
        %v1356 = vmul.f32 %v1354, %v1355
        %v1357 = vsub.f32 1.0, %v1356
        %v1358 = vmul.f32 %v1355, %v1357
        %v1359 = vadd.f32 %v1355, %v1358
        %vm1360 = vweird.f32 %v1354
        %vm1361 = vweird.f32 %v1355
        %vm1362 = vmor %vm1360, %vm1361
        %v1363 = vsel %vm1362, %v1355, %v1359
        %v1364 = vand.u32 2147483647, %v1354
        %vm1365 = vcmp.eq.f32.partialorder %v1364, 8.507059e+37
        %v1366 = vand.u32 %v1354, 2147483648
        %v1367 = vor.u32 1.1754944e-38, %v1366
        %v1368 = vsel %vm1365, %v1367, %v1363
        %v1369 = vmul.f32 %v1351, %v1368
        %1370 = vrot.lane.b32.xlu0 %v790, 108
        %v1371 = vpop.permute.xlu0 %1370
        %v1374 = vsel %vm823, %v1369, 0
        %1376 = vmatpush.msra.mxu0 0.0
        %1377 = vmatpush.msra.mxu0 0.0
        %1378 = vmatpush.msra.mxu0 0.0
        %1379 = vmatpush.msra.mxu0 0.0
        %1380 = vmatpush.msra.mxu0 0.0
        %1381 = vmatpush.msra.mxu0 0.0
        %1382 = vmatpush.msra.mxu0 0.0
        %1383 = vmatpush.msra.mxu0 0.0
        %1384 = vmatpush.msra.mxu0 0.0
        %1385 = vmatpush.msra.mxu0 0.0
        %1386 = vmatpush.msra.mxu0 0.0
        %1387 = vmatpush.msra.mxu0 0.0
        %1388 = vmatpush.msra.mxu0 0.0
        %1389 = vmatpush.msra.mxu0 0.0
        %1390 = vmatpush.msra.mxu0 0.0
        %1391 = vmatpush.msra.mxu0 %v1371
        %1392 = vmatmul.f32.gmra.mxu0 %v1374
        %v1393 = vpop.f32.mrf.mxu0
        %v1394 = vadd.f32 0.0, %v1393
        %1395 = vdwg.mxu0
        %v1396 = vrot.slane %v794, 4
        %v1398 = vsel %vm796, %v1394, 0
        %v1400 = vsel %vm955, %v1396, 0
        %1402 = vmatpush.msra.mxu0 0.0
        %1403 = vmatpush.msra.mxu0 0.0
        %1404 = vmatpush.msra.mxu0 0.0
        %1405 = vmatpush.msra.mxu0 0.0
        %1406 = vmatpush.msra.mxu0 0.0
        %1407 = vmatpush.msra.mxu0 0.0
        %1408 = vmatpush.msra.mxu0 0.0
        %1409 = vmatpush.msra.mxu0 0.0
        %1410 = vmatpush.msra.mxu0 0.0
        %1411 = vmatpush.msra.mxu0 0.0
        %1412 = vmatpush.msra.mxu0 0.0
        %1413 = vmatpush.msra.mxu0 0.0
        %1414 = vmatpush.msra.mxu0 0.0
        %1415 = vmatpush.msra.mxu0 0.0
        %1416 = vmatpush.msra.mxu0 0.0
        %1417 = vmatpush.msra.mxu0 %v1400
        %1418 = vmatmul.f32.gmra.mxu0 %v1398
        %v1419 = vpop.f32.mrf.mxu0
        %v1420 = vadd.f32 0.0, %v1419
        %1421 = vdwg.mxu0
        %v1422 = vadd.f32 %v1317, %v1420
        %1423 = vrot.lane.b32.xlu0 %v728, 104
        %v1424 = vpop.permute.xlu0 %1423
        %1425 = vrot.lane.b32.xlu0 %v759, 104
        %v1426 = vpop.permute.xlu0 %1425
        %v1427 = vsel %vm796, %v1424, 0
        %v1429 = vsel %vm796, %v1426, 0
        %1431 = vmatpush.xpose.msra.mxu0 0.0
        %1432 = vmatpush.xpose.msra.mxu0 0.0
        %1433 = vmatpush.xpose.msra.mxu0 0.0
        %1434 = vmatpush.xpose.msra.mxu0 0.0
        %1435 = vmatpush.xpose.msra.mxu0 0.0
        %1436 = vmatpush.xpose.msra.mxu0 0.0
        %1437 = vmatpush.xpose.msra.mxu0 0.0
        %1438 = vmatpush.xpose.msra.mxu0 0.0
        %1439 = vmatpush.xpose.msra.mxu0 0.0
        %1440 = vmatpush.xpose.msra.mxu0 0.0
        %1441 = vmatpush.xpose.msra.mxu0 0.0
        %1442 = vmatpush.xpose.msra.mxu0 0.0
        %1443 = vmatpush.xpose.msra.mxu0 0.0
        %1444 = vmatpush.xpose.msra.mxu0 0.0
        %1445 = vmatpush.xpose.msra.mxu0 0.0
        %1446 = vmatpush.xpose.msra.mxu0 %v1429
        %1447 = vmatmul.f32.gmra.mxu0 %v1427
        %v1448 = vpop.f32.mrf.mxu0
        %v1449 = vadd.f32 0.0, %v1448
        %1450 = vdwg.mxu0
        %v1451 = vsel %vm823, %v1449, -inf
        %1452 = vmax.xlane.f32.xlu0 %v1451
        %v1453 = vpop.xlane.xlu0 %1452
        %v1454 = vsub.f32 %v1449, %v1453
        %v1455 = vmul.f32 %v1454, 1.442695
        %v1456 = vpow.pop %v1455
        %v1457 = vsel %vm823, %v1456, 0.0
        %1458 = vadd.xlane.f32.xlu0 %v1457
        %v1459 = vpop.xlane.xlu0 %1458
        %v1460 = vrcp.pop %v1459
        %v1461 = vmul.f32 %v1459, %v1460
        %v1462 = vsub.f32 1.0, %v1461
        %v1463 = vmul.f32 %v1460, %v1462
        %v1464 = vadd.f32 %v1460, %v1463
        %vm1465 = vweird.f32 %v1459
        %vm1466 = vweird.f32 %v1460
        %vm1467 = vmor %vm1465, %vm1466
        %v1468 = vsel %vm1467, %v1460, %v1464
        %v1469 = vand.u32 2147483647, %v1459
        %vm1470 = vcmp.eq.f32.partialorder %v1469, 8.507059e+37
        %v1471 = vand.u32 %v1459, 2147483648
        %v1472 = vor.u32 1.1754944e-38, %v1471
        %v1473 = vsel %vm1470, %v1472, %v1468
        %v1474 = vmul.f32 %v1456, %v1473
        %1475 = vrot.lane.b32.xlu0 %v790, 104
        %v1476 = vpop.permute.xlu0 %1475
        %v1479 = vsel %vm823, %v1474, 0
        %1481 = vmatpush.msra.mxu0 0.0
        %1482 = vmatpush.msra.mxu0 0.0
        %1483 = vmatpush.msra.mxu0 0.0
        %1484 = vmatpush.msra.mxu0 0.0
        %1485 = vmatpush.msra.mxu0 0.0
        %1486 = vmatpush.msra.mxu0 0.0
        %1487 = vmatpush.msra.mxu0 0.0
        %1488 = vmatpush.msra.mxu0 0.0
        %1489 = vmatpush.msra.mxu0 0.0
        %1490 = vmatpush.msra.mxu0 0.0
        %1491 = vmatpush.msra.mxu0 0.0
        %1492 = vmatpush.msra.mxu0 0.0
        %1493 = vmatpush.msra.mxu0 0.0
        %1494 = vmatpush.msra.mxu0 0.0
        %1495 = vmatpush.msra.mxu0 0.0
        %1496 = vmatpush.msra.mxu0 %v1476
        %1497 = vmatmul.f32.gmra.mxu0 %v1479
        %v1498 = vpop.f32.mrf.mxu0
        %v1499 = vadd.f32 0.0, %v1498
        %1500 = vdwg.mxu0
        %v1502 = vsel %vm796, %v1499, 0
        %v1505 = vsel %vm955, %v795, 0
        %1507 = vmatpush.msra.mxu0 0.0
        %1508 = vmatpush.msra.mxu0 0.0
        %1509 = vmatpush.msra.mxu0 0.0
        %1510 = vmatpush.msra.mxu0 0.0
        %1511 = vmatpush.msra.mxu0 0.0
        %1512 = vmatpush.msra.mxu0 0.0
        %1513 = vmatpush.msra.mxu0 0.0
        %1514 = vmatpush.msra.mxu0 0.0
        %1515 = vmatpush.msra.mxu0 0.0
        %1516 = vmatpush.msra.mxu0 0.0
        %1517 = vmatpush.msra.mxu0 0.0
        %1518 = vmatpush.msra.mxu0 0.0
        %1519 = vmatpush.msra.mxu0 0.0
        %1520 = vmatpush.msra.mxu0 0.0
        %1521 = vmatpush.msra.mxu0 0.0
        %1522 = vmatpush.msra.mxu0 %v1505
        %1523 = vmatmul.f32.gmra.mxu0 %v1502
        %v1524 = vpop.f32.mrf.mxu0
        %v1525 = vadd.f32 0.0, %v1524
        %1526 = vdwg.mxu0
        %v1527 = vadd.f32 %v1422, %v1525
        %1528 = vrot.lane.b32.xlu0 %v728, 100
        %v1529 = vpop.permute.xlu0 %1528
        %1530 = vrot.lane.b32.xlu0 %v759, 100
        %v1531 = vpop.permute.xlu0 %1530
        %v1532 = vsel %vm796, %v1529, 0
        %v1534 = vsel %vm796, %v1531, 0
        %1536 = vmatpush.xpose.msra.mxu0 0.0
        %1537 = vmatpush.xpose.msra.mxu0 0.0
        %1538 = vmatpush.xpose.msra.mxu0 0.0
        %1539 = vmatpush.xpose.msra.mxu0 0.0
        %1540 = vmatpush.xpose.msra.mxu0 0.0
        %1541 = vmatpush.xpose.msra.mxu0 0.0
        %1542 = vmatpush.xpose.msra.mxu0 0.0
        %1543 = vmatpush.xpose.msra.mxu0 0.0
        %1544 = vmatpush.xpose.msra.mxu0 0.0
        %1545 = vmatpush.xpose.msra.mxu0 0.0
        %1546 = vmatpush.xpose.msra.mxu0 0.0
        %1547 = vmatpush.xpose.msra.mxu0 0.0
        %1548 = vmatpush.xpose.msra.mxu0 0.0
        %1549 = vmatpush.xpose.msra.mxu0 0.0
        %1550 = vmatpush.xpose.msra.mxu0 0.0
        %1551 = vmatpush.xpose.msra.mxu0 %v1534
        %1552 = vmatmul.f32.gmra.mxu0 %v1532
        %v1553 = vpop.f32.mrf.mxu0
        %v1554 = vadd.f32 0.0, %v1553
        %1555 = vdwg.mxu0
        %v1556 = vsel %vm823, %v1554, -inf
        %1557 = vmax.xlane.f32.xlu0 %v1556
        %v1558 = vpop.xlane.xlu0 %1557
        %v1559 = vsub.f32 %v1554, %v1558
        %v1560 = vmul.f32 %v1559, 1.442695
        %v1561 = vpow.pop %v1560
        %v1562 = vsel %vm823, %v1561, 0.0
        %1563 = vadd.xlane.f32.xlu0 %v1562
        %v1564 = vpop.xlane.xlu0 %1563
        %v1565 = vrcp.pop %v1564
        %v1566 = vmul.f32 %v1564, %v1565
        %v1567 = vsub.f32 1.0, %v1566
        %v1568 = vmul.f32 %v1565, %v1567
        %v1569 = vadd.f32 %v1565, %v1568
        %vm1570 = vweird.f32 %v1564
        %vm1571 = vweird.f32 %v1565
        %vm1572 = vmor %vm1570, %vm1571
        %v1573 = vsel %vm1572, %v1565, %v1569
        %v1574 = vand.u32 2147483647, %v1564
        %vm1575 = vcmp.eq.f32.partialorder %v1574, 8.507059e+37
        %v1576 = vand.u32 %v1564, 2147483648
        %v1577 = vor.u32 1.1754944e-38, %v1576
        %v1578 = vsel %vm1575, %v1577, %v1573
        %v1579 = vmul.f32 %v1561, %v1578
        %1580 = vrot.lane.b32.xlu0 %v790, 100
        %v1581 = vpop.permute.xlu0 %1580
        %v1584 = vsel %vm823, %v1579, 0
        %1586 = vmatpush.msra.mxu0 0.0
        %1587 = vmatpush.msra.mxu0 0.0
        %1588 = vmatpush.msra.mxu0 0.0
        %1589 = vmatpush.msra.mxu0 0.0
        %1590 = vmatpush.msra.mxu0 0.0
        %1591 = vmatpush.msra.mxu0 0.0
        %1592 = vmatpush.msra.mxu0 0.0
        %1593 = vmatpush.msra.mxu0 0.0
        %1594 = vmatpush.msra.mxu0 0.0
        %1595 = vmatpush.msra.mxu0 0.0
        %1596 = vmatpush.msra.mxu0 0.0
        %1597 = vmatpush.msra.mxu0 0.0
        %1598 = vmatpush.msra.mxu0 0.0
        %1599 = vmatpush.msra.mxu0 0.0
        %1600 = vmatpush.msra.mxu0 0.0
        %1601 = vmatpush.msra.mxu0 %v1581
        %1602 = vmatmul.f32.gmra.mxu0 %v1584
        %v1603 = vpop.f32.mrf.mxu0
        %v1604 = vadd.f32 0.0, %v1603
        %1605 = vdwg.mxu0
        %v1606 = vrot.slane %v795, 4
        %v1608 = vsel %vm796, %v1604, 0
        %v1610 = vsel %vm955, %v1606, 0
        %1612 = vmatpush.msra.mxu0 0.0
        %1613 = vmatpush.msra.mxu0 0.0
        %1614 = vmatpush.msra.mxu0 0.0
        %1615 = vmatpush.msra.mxu0 0.0
        %1616 = vmatpush.msra.mxu0 0.0
        %1617 = vmatpush.msra.mxu0 0.0
        %1618 = vmatpush.msra.mxu0 0.0
        %1619 = vmatpush.msra.mxu0 0.0
        %1620 = vmatpush.msra.mxu0 0.0
        %1621 = vmatpush.msra.mxu0 0.0
        %1622 = vmatpush.msra.mxu0 0.0
        %1623 = vmatpush.msra.mxu0 0.0
        %1624 = vmatpush.msra.mxu0 0.0
        %1625 = vmatpush.msra.mxu0 0.0
        %1626 = vmatpush.msra.mxu0 0.0
        %1627 = vmatpush.msra.mxu0 %v1610
        %1628 = vmatmul.f32.gmra.mxu0 %v1608
        %v1629 = vpop.f32.mrf.mxu0
        %v1630 = vadd.f32 0.0, %v1629
        %1631 = vdwg.mxu0
        %v1632 = vadd.f32 %v1527, %v1630
        %v1633 = vld [vmem:[%s10] sm:$0x1]
        %v1635 = vperm.slane %v1633, 0
        %v1637 = vadd.f32 %v1632, %v1635
        %v1638 = vadd.f32 %v695, %v1637
        %v1639 = vsel %vm706, %v1638, 0.0
        %1640 = vadd.xlane.f32.xlu0 %v1639
        %v1641 = vpop.xlane.xlu0 %1640
        %v1642 = vrcp.pop 32.0
        %v1643 = vmul.f32 32.0, %v1642
        %v1644 = vsub.f32 1.0, %v1643
        %v1645 = vmul.f32 %v1642, %v1644
        %v1646 = vadd.f32 %v1642, %v1645
        %vm1647 = vweird.f32 %v1642
        %v1648 = vsel %vm1647, %v1642, %v1646
        %v1649 = vmul.f32 %v1641, %v1648
        %v1650 = vsub.f32 %v1638, %v1649
        %v1651 = vmul.f32 %v1650, %v1650
        %v1652 = vsel %vm706, %v1651, 0.0
        %1653 = vadd.xlane.f32.xlu0 %v1652
        %v1654 = vpop.xlane.xlu0 %1653
        %v1655 = vmul.f32 %v1654, %v1648
        %v1656 = vadd.f32 %v1655, 1e-05
        %v1657 = vrsqrt.pop %v1656
        %v1658 = vmul.f32 %v1657, %v1656
        %v1659 = vmul.f32 %v1658, %v1657
        %v1660 = vmul.f32 0.5, %v1659
        %v1661 = vsub.f32 1.5, %v1660
        %v1662 = vmul.f32 %v1657, %v1661
        %vm1663 = vweird.f32 %v1656
        %vm1664 = vweird.f32 %v1657
        %vm1665 = vmor %vm1663, %vm1664
        %v1666 = vsel %vm1665, %v1657, %v1662
        %v1667 = vmul.f32 %v1650, %v1666
        %v1668 = vld [vmem:[%s11] sm:$0x1]
        %v1670 = vperm.slane %v1668, 0
        %v1672 = vmul.f32 %v1667, %v1670
        %v1673 = vld [vmem:[%s12] sm:$0x1]
        %v1675 = vperm.slane %v1673, 0
        %v1677 = vadd.f32 %v1672, %v1675
        %v1678 = vld [vmem:[%s13] sm:$0xff]
        %v1679 = vld [vmem:[%s13 + $0x8] sm:$0xff]
        %v1680 = vld [vmem:[%s13 + $0x10] sm:$0xff]
        %v1681 = vld [vmem:[%s13 + $0x18] sm:$0xff]
        %v1682 = vld [vmem:[%s14] sm:$0x1]
        %v1684 = vperm.slane %v1682, 0
        %v1687 = vsel %vm706, %v1677, 0
        %1689 = vmatpush.msra.mxu0 0.0
        %1690 = vmatpush.msra.mxu0 0.0
        %1691 = vmatpush.msra.mxu0 0.0
        %1692 = vmatpush.msra.mxu0 0.0
        %1693 = vmatpush.msra.mxu0 0.0
        %1694 = vmatpush.msra.mxu0 0.0
        %1695 = vmatpush.msra.mxu0 0.0
        %1696 = vmatpush.msra.mxu0 0.0
        %1697 = vmatpush.msra.mxu0 0.0
        %1698 = vmatpush.msra.mxu0 0.0
        %1699 = vmatpush.msra.mxu0 0.0
        %1700 = vmatpush.msra.mxu0 0.0
        %1701 = vmatpush.msra.mxu0 %v1681
        %1702 = vmatpush.msra.mxu0 %v1680
        %1703 = vmatpush.msra.mxu0 %v1679
        %1704 = vmatpush.msra.mxu0 %v1678
        %1705 = vmatmul.f32.gmra.mxu0 %v1687
        %v1706 = vpop.f32.mrf.mxu0
        %v1707 = vadd.f32 %v1684, %v1706
        %1708 = vdwg.mxu0
        %v1709 = vmax.f32 %v1707, 0.0
        %v1710 = vld [vmem:[%s15] sm:$0xff]
        %v1711 = vld [vmem:[%s15 + $0x8] sm:$0xff]
        %v1712 = vld [vmem:[%s15 + $0x10] sm:$0xff]
        %v1713 = vld [vmem:[%s15 + $0x18] sm:$0xff]
        %v1714 = vld [vmem:[%s15 + $0x20] sm:$0xff]
        %v1715 = vld [vmem:[%s15 + $0x28] sm:$0xff]
        %v1716 = vld [vmem:[%s15 + $0x30] sm:$0xff]
        %v1717 = vld [vmem:[%s15 + $0x38] sm:$0xff]
        %v1718 = vld [vmem:[%s15 + $0x40] sm:$0xff]
        %v1719 = vld [vmem:[%s15 + $0x48] sm:$0xff]
        %v1720 = vld [vmem:[%s15 + $0x50] sm:$0xff]
        %v1721 = vld [vmem:[%s15 + $0x58] sm:$0xff]
        %v1722 = vld [vmem:[%s15 + $0x60] sm:$0xff]
        %v1723 = vld [vmem:[%s15 + $0x68] sm:$0xff]
        %v1724 = vld [vmem:[%s15 + $0x70] sm:$0xff]
        %v1725 = vld [vmem:[%s15 + $0x78] sm:$0xff]
        %v1726 = vld [vmem:[%s16] sm:$0x1]
        %v1728 = vperm.slane %v1726, 0
        %1730 = vmatpush.msra.mxu0 %v1725
        %1731 = vmatpush.msra.mxu0 %v1724
        %1732 = vmatpush.msra.mxu0 %v1723
        %1733 = vmatpush.msra.mxu0 %v1722
        %1734 = vmatpush.msra.mxu0 %v1721
        %1735 = vmatpush.msra.mxu0 %v1720
        %1736 = vmatpush.msra.mxu0 %v1719
        %1737 = vmatpush.msra.mxu0 %v1718
        %1738 = vmatpush.msra.mxu0 %v1717
        %1739 = vmatpush.msra.mxu0 %v1716
        %1740 = vmatpush.msra.mxu0 %v1715
        %1741 = vmatpush.msra.mxu0 %v1714
        %1742 = vmatpush.msra.mxu0 %v1713
        %1743 = vmatpush.msra.mxu0 %v1712
        %1744 = vmatpush.msra.mxu0 %v1711
        %1745 = vmatpush.msra.mxu0 %v1710
        %1746 = vmatmul.f32.gmra.mxu0 %v1709
        %v1747 = vpop.f32.mrf.mxu0
        %v1748 = vadd.f32 %v1728, %v1747
        %1749 = vdwg.mxu0
        %v1750 = vadd.f32 %v1677, %v1748
        %v1751 = vsel %vm706, %v1750, 0.0
        %1752 = vadd.xlane.f32.xlu0 %v1751
        %v1753 = vpop.xlane.xlu0 %1752
        %v1754 = vmul.f32 %v1753, %v1648
        %v1755 = vsub.f32 %v1750, %v1754
        %v1756 = vmul.f32 %v1755, %v1755
        %v1757 = vsel %vm706, %v1756, 0.0
        %1758 = vadd.xlane.f32.xlu0 %v1757
        %v1759 = vpop.xlane.xlu0 %1758
        %v1760 = vmul.f32 %v1759, %v1648
        %v1761 = vadd.f32 %v1760, 1e-05
        %v1762 = vrsqrt.pop %v1761
        %v1763 = vmul.f32 %v1762, %v1761
        %v1764 = vmul.f32 %v1763, %v1762
        %v1765 = vmul.f32 0.5, %v1764
        %v1766 = vsub.f32 1.5, %v1765
        %v1767 = vmul.f32 %v1762, %v1766
        %vm1768 = vweird.f32 %v1761
        %vm1769 = vweird.f32 %v1762
        %vm1770 = vmor %vm1768, %vm1769
        %v1771 = vsel %vm1770, %v1762, %v1767
        %v1772 = vmul.f32 %v1755, %v1771
        %v1773 = vld [vmem:[%s17] sm:$0x1]
        %v1775 = vperm.slane %v1773, 0
        %v1777 = vmul.f32 %v1772, %v1775
        %v1778 = vld [vmem:[%s18] sm:$0x1]
        %v1780 = vperm.slane %v1778, 0
        %v1782 = vadd.f32 %v1777, %v1780
        %1783 = vst.msk [vmem:[%s694] sm:$0xff] %vm706, %v1782
        %s1784 = sand.u32 %s461, 1
        %s1785 = scalar_lea.sflag [#allocation4], %s1784
        %s1786 = sand.u32 %s461, 1
        %s1787 = smul.addr %s1786, 8
        %s1788 = scalar_lea.vmem [#allocation8], %s1787
        // Predicated region
        $region109: #{tpu_custom_call.1} parent=95 // pred_check
          %p1789 = pneg %p471
        $region110: #{tpu_custom_call.1} parent=95 // pred_check_branch
          %1791 = sbr.rel (%p1789) target = $region112
        $region111: #{tpu_custom_call.1} parent=95 // pred_region
          %1793 = vsyncadd %s1785, 0
          %s1794 = smul.addr %s39, 8
          %s1795 = scalar_lea.hbm %s19, %s1794
          %s1797 = sshll.u32 %s1788, 4
          %s1798 = int_to_ptr.vmem [resolvable:$true] %s1797
          %s1799 = sshll.u32 %s1795, 4
          %s1800 = int_to_ptr.hbm [resolvable:$true] %s1799
          %1802 = dma.vmem_to_hbm [thread:$0]  %s1798, 128, %s1800, %s1785
        $region112: #{tpu_custom_call.1} parent=95 // pred_fallthru
          _
      $region96: #{tpu_custom_call.1} parent=5 // pred_fallthru
        _
      %p1803 = scmp.le.s32.totalorder 2, %s34
      // Predicated region
      $region113: #{tpu_custom_call.1} parent=5 // pred_check
        %p1804 = pneg %p1803
      $region114: #{tpu_custom_call.1} parent=5 // pred_check_branch
        %1806 = sbr.rel (%p1804) target = $region116
      $region115: #{tpu_custom_call.1} parent=5 // pred_region
        %s1807 = ssub.s32 %s34, 2
        // Predicated region
        $region117: #{tpu_custom_call.1} parent=115 // pred_check
          %p1808 = pneg %p477
        $region118: #{tpu_custom_call.1} parent=115 // pred_check_branch
          %1810 = sbr.rel (%p1808) target = $region120
        $region119: #{tpu_custom_call.1} parent=115 // pred_region
          %s1811 = sand.u32 %s462, 1
          %s1812 = scalar_lea.sflag [#allocation4], %s1811
          %s1813 = sand.u32 %s462, 1
          %s1814 = smul.addr %s1813, 8
          %s1815 = scalar_lea.vmem [#allocation8], %s1814
          %1817 = dma.done %s1812, 128
        $region120: #{tpu_custom_call.1} parent=115 // pred_fallthru
          _
      $region116: #{tpu_custom_call.1} parent=5 // pred_fallthru
        _
    $region6: #{tpu_custom_call.1} parent=1 // loop_footer
      %s38 = sadd.s32 1, %s34
    $region7: #{tpu_custom_call.1} parent=1 // loop_footer_branch
      %33 = sbr.rel target = $region3
    $region8: #{tpu_custom_call.1} parent=1 // loop_exit
      _
    %1818 = vsyncpa [#allocation3], 1
    %s1819 = scalar_lea.sflag [#allocation3], 1
    %1820 = vsyncpa %s1819, 1
    %1821 = vsyncpa [#allocation6], 1
    %s1822 = scalar_lea.sflag [#allocation6], 1
    %1823 = vsyncpa %s1822, 1
    %1824 = vsyncpa [#allocation4], 1
    %s1825 = scalar_lea.sflag [#allocation4], 1
    %1826 = vsyncpa %s1825, 1

</llo_original>
